<compile_context>
chip_gen: v6e
topology: v6e:2x2x1
jax: 0.10.0
libtpu: 0.0.40
codegen_flags: <defaults>
</compile_context>

<pallas_src>
import functools

import numpy as np

import jax
import jax.numpy as jnp
from jax.experimental import pallas as pl
from jax.experimental.pallas import tpu as pltpu


_APPROX_SIGMOID = False   # flip to use the EUP reciprocal (slight numeric drift)


def _sigmoid(z):
    e = jnp.exp(-z)
    if _APPROX_SIGMOID:
        return pl.reciprocal(1.0 + e, approx=True)
    return 1.0 / (1.0 + e)


# ----------------------------------------------------------------------------
# Fused Pallas kernel
# ----------------------------------------------------------------------------
def _lstm_attention_kernel(x_ref, h0_ref, c0_ref, wih_ref, whh_ref, b_ref,
                           w0w_ref, w0b_ref, awr_ref, aws_ref, ab_ref,
                           attn_ref, out_ref, seq_ref, pg_ref,
                           *, seq_len, num_layers, hidden, batch_p, mode):
    T, L, H, Bp = seq_len, num_layers, hidden, batch_p

    # ---------------- stacked LSTM recurrence -------------------------------
    h = h0_ref[0]
    for l in range(L):
        # TODO(synk): inter-layer dropout (p=0.5) is training-only; eval -> identity.
        src = x_ref if l == 0 else seq_ref          # (T*Bp, H) layer input
        wih_l = wih_ref[l]                          # (H, 4H)  gate order i,f,g,o
        whh_l = whh_ref[l]                          # (H, 4H)
        # Hoisted input-to-hidden matmul + bias for ALL timesteps at once.
        pg_ref[...] = (jnp.dot(src[...], wih_l, preferred_element_type=jnp.float32)
                       + b_ref[l])                  # (T*Bp, 4H)
        h = h0_ref[l]                               # (Bp, H)
        c = c0_ref[l]                               # (Bp, H)
        for t in range(T):
            gates = (pg_ref[pl.ds(t * Bp, Bp), :]
                     + jnp.dot(h, whh_l, preferred_element_type=jnp.float32))
            i_g = _sigmoid(gates[:, 0 * H:1 * H])
            f_g = _sigmoid(gates[:, 1 * H:2 * H])
            g_g = jnp.tanh(gates[:, 2 * H:3 * H])
            o_g = _sigmoid(gates[:, 3 * H:4 * H])
            c = f_g * c + i_g * g_g
            h = o_g * jnp.tanh(c)
            seq_ref[pl.ds(t * Bp, Bp), :] = h       # becomes next layer's input
    h_n = h                                         # (Bp, H): last layer, last t

    if mode == "none":
        attn_ref[...] = jnp.zeros(attn_ref.shape, attn_ref.dtype)
        out_ref[...] = h_n.astype(out_ref.dtype)    # == rnn_out[:, -1, :]
        return

    # ---------------- rnn2 = tanh(w0(rnn_out)) : flat, in place -------------
    seq_ref[...] = jnp.tanh(
        jnp.dot(seq_ref[...], w0w_ref[...], preferred_element_type=jnp.float32)
        + w0b_ref[...])

    # ---------------- attention logits: ONE flat matmul ---------------------
    # attn_ref (flat (T*Bp, 1) output) doubles as the logits / weights buffer.
    attn_ref[...] = jnp.dot(seq_ref[...], awr_ref[...],
                            preferred_element_type=jnp.float32)

    # per-batch-row constant half of attn_fc (last-state term + bias)
    base = ab_ref[0, 0]
    if mode == "attention":
        base = base + jnp.dot(h_n, aws_ref[...],
                              preferred_element_type=jnp.float32)   # (Bp, 1)

    def logit_blk(t):                               # (Bp, 1), aligned block read
        return attn_ref[pl.ds(t * Bp, Bp), :] + base

    # softmax over time, operating on flat aligned blocks (O(T), O(1) vregs)
    m = logit_blk(0)
    for t in range(1, T):
        m = jnp.maximum(m, logit_blk(t))
    s = jnp.zeros((Bp, 1), jnp.float32)
    for t in range(T):
        e_t = jnp.exp(logit_blk(t) - m)
        attn_ref[pl.ds(t * Bp, Bp), :] = e_t        # stash exp for pass 2
        s = s + e_t
    inv = 1.0 / s

    # normalize + attention-weighted pooling over the in-place rnn2 buffer
    acc = jnp.zeros((Bp, H), jnp.float32)
    for t in range(T):
        w_t = attn_ref[pl.ds(t * Bp, Bp), :] * inv  # (Bp, 1) softmax weight
        attn_ref[pl.ds(t * Bp, Bp), :] = w_t
        acc = acc + w_t * seq_ref[pl.ds(t * Bp, Bp), :]
    out_ref[...] = acc.astype(out_ref.dtype)


# ----------------------------------------------------------------------------
# Host wrapper
# ----------------------------------------------------------------------------
def lstm_attention_forward(params, x, h0, c0, mode="attention"):
    """x: (B, T, H); h0, c0: (L, B, H) -> (attn (B, T), out (B, H))."""
    B, T, H = x.shape
    L = h0.shape[0]

    # Pad batch to a sublane multiple so every timestep slab is tile-aligned.
    Bp = max(8, ((B + 7) // 8) * 8)
    pad = Bp - B
    xp = jnp.pad(x, ((0, pad), (0, 0), (0, 0)))
    h0p = jnp.pad(h0, ((0, 0), (0, pad), (0, 0)))
    c0p = jnp.pad(c0, ((0, 0), (0, pad), (0, 0)))
    # time-major, flattened: rows [t*Bp, (t+1)*Bp) hold timestep t.
    x_flat = jnp.transpose(xp, (1, 0, 2)).reshape(T * Bp, H)

    vmem = pl.BlockSpec(memory_space=pltpu.MemorySpace.VMEM)
    smem = pl.BlockSpec(memory_space=pltpu.MemorySpace.SMEM)

    # Explicit VMEM budget from actual buffer sizes (2x headroom), capped for
    # v7x's 64 MiB physical VMEM.
    n_f32 = (x_flat.size + h0p.size + c0p.size
             + params["wih"].size + params["whh"].size + params["b"].size
             + params["w0w"].size + params["w0b"].size
             + params["awr"].size + params["aws"].size + params["ab"].size
             + T * Bp + Bp * H                    # outputs
             + T * Bp * H + T * Bp * 4 * H)       # scratches
    vmem_limit = int(min(64 << 20, max(4 << 20, 2 * 4 * n_f32)))

    kernel = functools.partial(_lstm_attention_kernel, seq_len=T, num_layers=L,
                               hidden=H, batch_p=Bp, mode=mode)
    attn_flat, out_p = pl.pallas_call(
        kernel,
        out_shape=(jax.ShapeDtypeStruct((T * Bp, 1), jnp.float32),
                   jax.ShapeDtypeStruct((Bp, H), jnp.float32)),
        in_specs=[vmem] * 10 + [smem],
        out_specs=(vmem, vmem),
        scratch_shapes=[pltpu.VMEM((T * Bp, H), jnp.float32),       # layer seq / rnn2
                        pltpu.VMEM((T * Bp, 4 * H), jnp.float32)],  # hoisted pre-gates
        compiler_params=pltpu.CompilerParams(vmem_limit_bytes=vmem_limit),
    )(x_flat, h0p, c0p,
      params["wih"], params["whh"], params["b"],
      params["w0w"], params["w0b"],
      params["awr"], params["aws"], params["ab"])

    # wrapper-side layout plumbing: flat (T*Bp, 1) -> (B, T); un-pad batch.
    attn = attn_flat.reshape(T, Bp).T[:B]
    out = out_p[:B]
    return attn, out


# ----------------------------------------------------------------------------
# Parameters (PyTorch-style init, transposed to x @ W layout) + pure-JAX ref
# ----------------------------------------------------------------------------
def init_params(key, hidden_channels, num_layers, attention="attention"):
    H, L = hidden_channels, num_layers
    bound = 1.0 / float(H) ** 0.5
    ks = jax.random.split(key, 9)
    u = lambda k, shape, b=bound: jax.random.uniform(k, shape, jnp.float32, -b, b)
    p = {}
    p["wih"] = u(ks[0], (L, H, 4 * H))                           # gate order i,f,g,o
    p["whh"] = u(ks[1], (L, H, 4 * H))
    p["b"] = u(ks[2], (L, 1, 4 * H)) + u(ks[3], (L, 1, 4 * H))   # b_ih + b_hh
    p["w0w"] = u(ks[4], (H, H))
    p["w0b"] = u(ks[5], (1, H))
    if attention == "attention":
        b2 = 1.0 / float(2 * H) ** 0.5
        p["awr"] = u(ks[6], (H, 1), b2)    # attn_fc weight, rnn_out half
        p["aws"] = u(ks[7], (H, 1), b2)    # attn_fc weight, last_state half
        p["ab"] = u(ks[8], (1, 1), b2)
    else:  # 'selfattention' (heads=1) or 'none'
        p["awr"] = u(ks[6], (H, 1))
        p["aws"] = jnp.zeros((H, 1), jnp.float32)
        p["ab"] = u(ks[8], (1, 1))
    return p


def lstm_attention_ref(params, x, h0, c0, mode="attention"):
    B, T, H = x.shape
    L = h0.shape[0]
    seq = x
    for l in range(L):
        h, c = h0[l], c0[l]
        outs = []
        for t in range(T):
            gates = seq[:, t, :] @ params["wih"][l] + h @ params["whh"][l] + params["b"][l]
            i_g = 1.0 / (1.0 + jnp.exp(-gates[:, :H]))
            f_g = 1.0 / (1.0 + jnp.exp(-gates[:, H:2 * H]))
            g_g = jnp.tanh(gates[:, 2 * H:3 * H])
            o_g = 1.0 / (1.0 + jnp.exp(-gates[:, 3 * H:]))
            c = f_g * c + i_g * g_g
            h = o_g * jnp.tanh(c)
            outs.append(h)
        seq = jnp.stack(outs, axis=1)
    h_n = h
    if mode == "none":
        return jnp.zeros((B, T), jnp.float32), seq[:, -1, :]
    r = jnp.tanh(seq @ params["w0w"] + params["w0b"])            # (B, T, H)
    logits = (r @ params["awr"])[..., 0]                         # (B, T)
    if mode == "attention":
        logits = logits + h_n @ params["aws"]
    logits = logits + params["ab"][0, 0]
    w = jax.nn.softmax(logits, axis=1)
    out = jnp.einsum("bt,bth->bh", w, r)
    return w, out


# ----------------------------------------------------------------------------
# Main
# ----------------------------------------------------------------------------
if __name__ == "__main__":
    hidden_channels = 32
    num_layers = 1          # >1 breaks the reference's squeeze(dim=0) in calAttention
    batch = 2
    seq_len = 8
    mode = "attention"

    key = jax.random.PRNGKey(0)
    k_p, k_x, k_h, k_c = jax.random.split(key, 4)

    params = init_params(k_p, hidden_channels, num_layers, mode)
    x = jax.random.normal(k_x, (batch, seq_len, hidden_channels), jnp.float32)
    # init_hidden(): torch.randn h0/c0 -> deterministic jax.random equivalents
    h0 = jax.random.normal(k_h, (num_layers, batch, hidden_channels), jnp.float32)
    c0 = jax.random.normal(k_c, (num_layers, batch, hidden_channels), jnp.float32)

    fwd = jax.jit(lambda p, xx, hh, cc: lstm_attention_forward(p, xx, hh, cc, mode=mode))
    attn, out = fwd(params, x, h0, c0)
    attn, out = jax.block_until_ready((attn, out))

    assert attn.shape == (batch, seq_len) and attn.dtype == jnp.float32, attn.shape
    assert out.shape == (batch, hidden_channels) and out.dtype == jnp.float32, out.shape

    # Pure-JAX reference check
    attn_r, out_r = lstm_attention_ref(params, x, h0, c0, mode)
    np.testing.assert_allclose(np.asarray(attn), np.asarray(attn_r), rtol=1e-3, atol=1e-3)
    np.testing.assert_allclose(np.asarray(out), np.asarray(out_r), rtol=1e-3, atol=1e-3)

    print("KERNEL_OK")
</pallas_src>

<mosaic_0001>
module attributes {stable_mosaic.version = 11 : i64} {
  func.func @_lstm_attention_kernel(%arg0: memref<64x32xf32, #tpu.memory_space<vmem>>, %arg1: memref<1x8x32xf32, #tpu.memory_space<vmem>>, %arg2: memref<1x8x32xf32, #tpu.memory_space<vmem>>, %arg3: memref<1x32x128xf32, #tpu.memory_space<vmem>>, %arg4: memref<1x32x128xf32, #tpu.memory_space<vmem>>, %arg5: memref<1x1x128xf32, #tpu.memory_space<vmem>>, %arg6: memref<32x32xf32, #tpu.memory_space<vmem>>, %arg7: memref<1x32xf32, #tpu.memory_space<vmem>>, %arg8: memref<32x1xf32, #tpu.memory_space<vmem>>, %arg9: memref<32x1xf32, #tpu.memory_space<vmem>>, %arg10: memref<1x1xf32, #tpu.memory_space<smem>>, %arg11: memref<64x1xf32, #tpu.memory_space<vmem>>, %arg12: memref<8x32xf32, #tpu.memory_space<vmem>>, %arg13: memref<64x32xf32, #tpu.memory_space<vmem>>, %arg14: memref<64x128xf32, #tpu.memory_space<vmem>>) attributes {dimension_semantics = [], scalar_prefetch = 0 : i64, scratch_operands = 2 : i64, tpu.core_type = #tpu.core_type<tc>} {
    %c0 = arith.constant 0 : index
    %c0_0 = arith.constant 0 : index
    %c0_1 = arith.constant 0 : index
    %0 = vector.load %arg3[%c0, %c0_0, %c0_1] : memref<1x32x128xf32, #tpu.memory_space<vmem>>, vector<1x32x128xf32>
    %1 = vector.shape_cast %0 : vector<1x32x128xf32> to vector<32x128xf32>
    %c0_2 = arith.constant 0 : index
    %c0_3 = arith.constant 0 : index
    %c0_4 = arith.constant 0 : index
    %2 = vector.load %arg4[%c0_2, %c0_3, %c0_4] : memref<1x32x128xf32, #tpu.memory_space<vmem>>, vector<1x32x128xf32>
    %3 = vector.shape_cast %2 : vector<1x32x128xf32> to vector<32x128xf32>
    %c0_5 = arith.constant 0 : index
    %c0_6 = arith.constant 0 : index
    %4 = vector.load %arg0[%c0_5, %c0_6] : memref<64x32xf32, #tpu.memory_space<vmem>>, vector<64x32xf32>
    %cst = arith.constant dense<0.000000e+00> : vector<64x128xf32>
    %5 = tpu.matmul %4, %1, %cst {dimension_numbers = #tpu.dot_dimension_numbers<[1], [0], [0], [1], [0, 0, 1, 1], [], []>} : vector<64x32xf32>, vector<32x128xf32>, vector<64x128xf32> -> vector<64x128xf32>
    %c0_7 = arith.constant 0 : index
    %c0_8 = arith.constant 0 : index
    %c0_9 = arith.constant 0 : index
    %6 = vector.load %arg5[%c0_7, %c0_8, %c0_9] : memref<1x1x128xf32, #tpu.memory_space<vmem>>, vector<1x1x128xf32>
    %7 = vector.shape_cast %6 : vector<1x1x128xf32> to vector<1x128xf32>
    %8 = vector.broadcast %7 : vector<1x128xf32> to vector<64x128xf32>
    %9 = arith.addf %5, %8 : vector<64x128xf32>
    %c0_10 = arith.constant 0 : index
    %c0_11 = arith.constant 0 : index
    %10 = vector.load %arg14[%c0_10, %c0_11] : memref<64x128xf32, #tpu.memory_space<vmem>>, vector<64x128xf32>
    tpu.vector_store %arg14[%c0_10, %c0_11], %9 {strides = array<i32>} : memref<64x128xf32, #tpu.memory_space<vmem>>, vector<64x128xf32>,
    %c0_12 = arith.constant 0 : index
    %c0_13 = arith.constant 0 : index
    %c0_14 = arith.constant 0 : index
    %11 = vector.load %arg1[%c0_12, %c0_13, %c0_14] : memref<1x8x32xf32, #tpu.memory_space<vmem>>, vector<1x8x32xf32>
    %12 = vector.shape_cast %11 : vector<1x8x32xf32> to vector<8x32xf32>
    %c0_15 = arith.constant 0 : index
    %c0_16 = arith.constant 0 : index
    %c0_17 = arith.constant 0 : index
    %13 = vector.load %arg2[%c0_15, %c0_16, %c0_17] : memref<1x8x32xf32, #tpu.memory_space<vmem>>, vector<1x8x32xf32>
    %14 = vector.shape_cast %13 : vector<1x8x32xf32> to vector<8x32xf32>
    %c0_18 = arith.constant 0 : index
    %c0_19 = arith.constant 0 : index
    %15 = vector.load %arg14[%c0_18, %c0_19] : memref<64x128xf32, #tpu.memory_space<vmem>>, vector<8x128xf32>
    %cst_20 = arith.constant dense<0.000000e+00> : vector<8x128xf32>
    %16 = tpu.matmul %12, %3, %cst_20 {dimension_numbers = #tpu.dot_dimension_numbers<[1], [0], [0], [1], [0, 0, 1, 1], [], []>} : vector<8x32xf32>, vector<32x128xf32>, vector<8x128xf32> -> vector<8x128xf32>
    %17 = arith.addf %15, %16 : vector<8x128xf32>
    %18 = vector.extract_strided_slice %17 {offsets = [0, 0], sizes = [8, 32], strides = [1, 1]} : vector<8x128xf32> to vector<8x32xf32>
    %cst_21 = arith.constant 0.000000e+00 : f32
    %19 = vector.broadcast %cst_21 : f32 to vector<8x32xf32>
    %20 = arith.subf %19, %18 : vector<8x32xf32>
    %21 = math.exp %20 : vector<8x32xf32>
    %cst_22 = arith.constant 1.000000e+00 : f32
    %22 = vector.broadcast %cst_22 : f32 to vector<8x32xf32>
    %23 = arith.addf %22, %21 : vector<8x32xf32>
    %cst_23 = arith.constant 1.000000e+00 : f32
    %24 = vector.broadcast %cst_23 : f32 to vector<8x32xf32>
    %25 = arith.divf %24, %23 : vector<8x32xf32>
    %26 = vector.extract_strided_slice %17 {offsets = [0, 32], sizes = [8, 32], strides = [1, 1]} : vector<8x128xf32> to vector<8x32xf32>
    %cst_24 = arith.constant 0.000000e+00 : f32
    %27 = vector.broadcast %cst_24 : f32 to vector<8x32xf32>
    %28 = arith.subf %27, %26 : vector<8x32xf32>
    %29 = math.exp %28 : vector<8x32xf32>
    %cst_25 = arith.constant 1.000000e+00 : f32
    %30 = vector.broadcast %cst_25 : f32 to vector<8x32xf32>
    %31 = arith.addf %30, %29 : vector<8x32xf32>
    %cst_26 = arith.constant 1.000000e+00 : f32
    %32 = vector.broadcast %cst_26 : f32 to vector<8x32xf32>
    %33 = arith.divf %32, %31 : vector<8x32xf32>
    %34 = vector.extract_strided_slice %17 {offsets = [0, 64], sizes = [8, 32], strides = [1, 1]} : vector<8x128xf32> to vector<8x32xf32>
    %35 = math.tanh %34 : vector<8x32xf32>
    %36 = vector.extract_strided_slice %17 {offsets = [0, 96], sizes = [8, 32], strides = [1, 1]} : vector<8x128xf32> to vector<8x32xf32>
    %cst_27 = arith.constant 0.000000e+00 : f32
    %37 = vector.broadcast %cst_27 : f32 to vector<8x32xf32>
    %38 = arith.subf %37, %36 : vector<8x32xf32>
    %39 = math.exp %38 : vector<8x32xf32>
    %cst_28 = arith.constant 1.000000e+00 : f32
    %40 = vector.broadcast %cst_28 : f32 to vector<8x32xf32>
    %41 = arith.addf %40, %39 : vector<8x32xf32>
    %cst_29 = arith.constant 1.000000e+00 : f32
    %42 = vector.broadcast %cst_29 : f32 to vector<8x32xf32>
    %43 = arith.divf %42, %41 : vector<8x32xf32>
    %44 = arith.mulf %33, %14 : vector<8x32xf32>
    %45 = arith.mulf %25, %35 : vector<8x32xf32>
    %46 = arith.addf %44, %45 : vector<8x32xf32>
    %47 = math.tanh %46 : vector<8x32xf32>
    %48 = arith.mulf %43, %47 : vector<8x32xf32>
    %c0_30 = arith.constant 0 : index
    %c0_31 = arith.constant 0 : index
    %49 = vector.load %arg13[%c0_30, %c0_31] : memref<64x32xf32, #tpu.memory_space<vmem>>, vector<8x32xf32>
    tpu.vector_store %arg13[%c0_30, %c0_31], %48 {strides = array<i32>} : memref<64x32xf32, #tpu.memory_space<vmem>>, vector<8x32xf32>,
    %c8 = arith.constant 8 : index
    %c0_32 = arith.constant 0 : index
    %50 = vector.load %arg14[%c8, %c0_32] : memref<64x128xf32, #tpu.memory_space<vmem>>, vector<8x128xf32>
    %cst_33 = arith.constant dense<0.000000e+00> : vector<8x128xf32>
    %51 = tpu.matmul %48, %3, %cst_33 {dimension_numbers = #tpu.dot_dimension_numbers<[1], [0], [0], [1], [0, 0, 1, 1], [], []>} : vector<8x32xf32>, vector<32x128xf32>, vector<8x128xf32> -> vector<8x128xf32>
    %52 = arith.addf %50, %51 : vector<8x128xf32>
    %53 = vector.extract_strided_slice %52 {offsets = [0, 0], sizes = [8, 32], strides = [1, 1]} : vector<8x128xf32> to vector<8x32xf32>
    %cst_34 = arith.constant 0.000000e+00 : f32
    %54 = vector.broadcast %cst_34 : f32 to vector<8x32xf32>
    %55 = arith.subf %54, %53 : vector<8x32xf32>
    %56 = math.exp %55 : vector<8x32xf32>
    %cst_35 = arith.constant 1.000000e+00 : f32
    %57 = vector.broadcast %cst_35 : f32 to vector<8x32xf32>
    %58 = arith.addf %57, %56 : vector<8x32xf32>
    %cst_36 = arith.constant 1.000000e+00 : f32
    %59 = vector.broadcast %cst_36 : f32 to vector<8x32xf32>
    %60 = arith.divf %59, %58 : vector<8x32xf32>
    %61 = vector.extract_strided_slice %52 {offsets = [0, 32], sizes = [8, 32], strides = [1, 1]} : vector<8x128xf32> to vector<8x32xf32>
    %cst_37 = arith.constant 0.000000e+00 : f32
    %62 = vector.broadcast %cst_37 : f32 to vector<8x32xf32>
    %63 = arith.subf %62, %61 : vector<8x32xf32>
    %64 = math.exp %63 : vector<8x32xf32>
    %cst_38 = arith.constant 1.000000e+00 : f32
    %65 = vector.broadcast %cst_38 : f32 to vector<8x32xf32>
    %66 = arith.addf %65, %64 : vector<8x32xf32>
    %cst_39 = arith.constant 1.000000e+00 : f32
    %67 = vector.broadcast %cst_39 : f32 to vector<8x32xf32>
    %68 = arith.divf %67, %66 : vector<8x32xf32>
    %69 = vector.extract_strided_slice %52 {offsets = [0, 64], sizes = [8, 32], strides = [1, 1]} : vector<8x128xf32> to vector<8x32xf32>
    %70 = math.tanh %69 : vector<8x32xf32>
    %71 = vector.extract_strided_slice %52 {offsets = [0, 96], sizes = [8, 32], strides = [1, 1]} : vector<8x128xf32> to vector<8x32xf32>
    %cst_40 = arith.constant 0.000000e+00 : f32
    %72 = vector.broadcast %cst_40 : f32 to vector<8x32xf32>
    %73 = arith.subf %72, %71 : vector<8x32xf32>
    %74 = math.exp %73 : vector<8x32xf32>
    %cst_41 = arith.constant 1.000000e+00 : f32
    %75 = vector.broadcast %cst_41 : f32 to vector<8x32xf32>
    %76 = arith.addf %75, %74 : vector<8x32xf32>
    %cst_42 = arith.constant 1.000000e+00 : f32
    %77 = vector.broadcast %cst_42 : f32 to vector<8x32xf32>
    %78 = arith.divf %77, %76 : vector<8x32xf32>
    %79 = arith.mulf %68, %46 : vector<8x32xf32>
    %80 = arith.mulf %60, %70 : vector<8x32xf32>
    %81 = arith.addf %79, %80 : vector<8x32xf32>
    %82 = math.tanh %81 : vector<8x32xf32>
    %83 = arith.mulf %78, %82 : vector<8x32xf32>
    %c8_43 = arith.constant 8 : index
    %c0_44 = arith.constant 0 : index
    %84 = vector.load %arg13[%c8_43, %c0_44] : memref<64x32xf32, #tpu.memory_space<vmem>>, vector<8x32xf32>
    tpu.vector_store %arg13[%c8_43, %c0_44], %83 {strides = array<i32>} : memref<64x32xf32, #tpu.memory_space<vmem>>, vector<8x32xf32>,
    %c16 = arith.constant 16 : index
    %c0_45 = arith.constant 0 : index
    %85 = vector.load %arg14[%c16, %c0_45] : memref<64x128xf32, #tpu.memory_space<vmem>>, vector<8x128xf32>
    %cst_46 = arith.constant dense<0.000000e+00> : vector<8x128xf32>
    %86 = tpu.matmul %83, %3, %cst_46 {dimension_numbers = #tpu.dot_dimension_numbers<[1], [0], [0], [1], [0, 0, 1, 1], [], []>} : vector<8x32xf32>, vector<32x128xf32>, vector<8x128xf32> -> vector<8x128xf32>
    %87 = arith.addf %85, %86 : vector<8x128xf32>
    %88 = vector.extract_strided_slice %87 {offsets = [0, 0], sizes = [8, 32], strides = [1, 1]} : vector<8x128xf32> to vector<8x32xf32>
    %cst_47 = arith.constant 0.000000e+00 : f32
    %89 = vector.broadcast %cst_47 : f32 to vector<8x32xf32>
    %90 = arith.subf %89, %88 : vector<8x32xf32>
    %91 = math.exp %90 : vector<8x32xf32>
    %cst_48 = arith.constant 1.000000e+00 : f32
    %92 = vector.broadcast %cst_48 : f32 to vector<8x32xf32>
    %93 = arith.addf %92, %91 : vector<8x32xf32>
    %cst_49 = arith.constant 1.000000e+00 : f32
    %94 = vector.broadcast %cst_49 : f32 to vector<8x32xf32>
    %95 = arith.divf %94, %93 : vector<8x32xf32>
    %96 = vector.extract_strided_slice %87 {offsets = [0, 32], sizes = [8, 32], strides = [1, 1]} : vector<8x128xf32> to vector<8x32xf32>
    %cst_50 = arith.constant 0.000000e+00 : f32
    %97 = vector.broadcast %cst_50 : f32 to vector<8x32xf32>
    %98 = arith.subf %97, %96 : vector<8x32xf32>
    %99 = math.exp %98 : vector<8x32xf32>
    %cst_51 = arith.constant 1.000000e+00 : f32
    %100 = vector.broadcast %cst_51 : f32 to vector<8x32xf32>
    %101 = arith.addf %100, %99 : vector<8x32xf32>
    %cst_52 = arith.constant 1.000000e+00 : f32
    %102 = vector.broadcast %cst_52 : f32 to vector<8x32xf32>
    %103 = arith.divf %102, %101 : vector<8x32xf32>
    %104 = vector.extract_strided_slice %87 {offsets = [0, 64], sizes = [8, 32], strides = [1, 1]} : vector<8x128xf32> to vector<8x32xf32>
    %105 = math.tanh %104 : vector<8x32xf32>
    %106 = vector.extract_strided_slice %87 {offsets = [0, 96], sizes = [8, 32], strides = [1, 1]} : vector<8x128xf32> to vector<8x32xf32>
    %cst_53 = arith.constant 0.000000e+00 : f32
    %107 = vector.broadcast %cst_53 : f32 to vector<8x32xf32>
    %108 = arith.subf %107, %106 : vector<8x32xf32>
    %109 = math.exp %108 : vector<8x32xf32>
    %cst_54 = arith.constant 1.000000e+00 : f32
    %110 = vector.broadcast %cst_54 : f32 to vector<8x32xf32>
    %111 = arith.addf %110, %109 : vector<8x32xf32>
    %cst_55 = arith.constant 1.000000e+00 : f32
    %112 = vector.broadcast %cst_55 : f32 to vector<8x32xf32>
    %113 = arith.divf %112, %111 : vector<8x32xf32>
    %114 = arith.mulf %103, %81 : vector<8x32xf32>
    %115 = arith.mulf %95, %105 : vector<8x32xf32>
    %116 = arith.addf %114, %115 : vector<8x32xf32>
    %117 = math.tanh %116 : vector<8x32xf32>
    %118 = arith.mulf %113, %117 : vector<8x32xf32>
    %c16_56 = arith.constant 16 : index
    %c0_57 = arith.constant 0 : index
    %119 = vector.load %arg13[%c16_56, %c0_57] : memref<64x32xf32, #tpu.memory_space<vmem>>, vector<8x32xf32>
    tpu.vector_store %arg13[%c16_56, %c0_57], %118 {strides = array<i32>} : memref<64x32xf32, #tpu.memory_space<vmem>>, vector<8x32xf32>,
    %c24 = arith.constant 24 : index
    %c0_58 = arith.constant 0 : index
    %120 = vector.load %arg14[%c24, %c0_58] : memref<64x128xf32, #tpu.memory_space<vmem>>, vector<8x128xf32>
    %cst_59 = arith.constant dense<0.000000e+00> : vector<8x128xf32>
    %121 = tpu.matmul %118, %3, %cst_59 {dimension_numbers = #tpu.dot_dimension_numbers<[1], [0], [0], [1], [0, 0, 1, 1], [], []>} : vector<8x32xf32>, vector<32x128xf32>, vector<8x128xf32> -> vector<8x128xf32>
    %122 = arith.addf %120, %121 : vector<8x128xf32>
    %123 = vector.extract_strided_slice %122 {offsets = [0, 0], sizes = [8, 32], strides = [1, 1]} : vector<8x128xf32> to vector<8x32xf32>
    %cst_60 = arith.constant 0.000000e+00 : f32
    %124 = vector.broadcast %cst_60 : f32 to vector<8x32xf32>
    %125 = arith.subf %124, %123 : vector<8x32xf32>
    %126 = math.exp %125 : vector<8x32xf32>
    %cst_61 = arith.constant 1.000000e+00 : f32
    %127 = vector.broadcast %cst_61 : f32 to vector<8x32xf32>
    %128 = arith.addf %127, %126 : vector<8x32xf32>
    %cst_62 = arith.constant 1.000000e+00 : f32
    %129 = vector.broadcast %cst_62 : f32 to vector<8x32xf32>
    %130 = arith.divf %129, %128 : vector<8x32xf32>
    %131 = vector.extract_strided_slice %122 {offsets = [0, 32], sizes = [8, 32], strides = [1, 1]} : vector<8x128xf32> to vector<8x32xf32>
    %cst_63 = arith.constant 0.000000e+00 : f32
    %132 = vector.broadcast %cst_63 : f32 to vector<8x32xf32>
    %133 = arith.subf %132, %131 : vector<8x32xf32>
    %134 = math.exp %133 : vector<8x32xf32>
    %cst_64 = arith.constant 1.000000e+00 : f32
    %135 = vector.broadcast %cst_64 : f32 to vector<8x32xf32>
    %136 = arith.addf %135, %134 : vector<8x32xf32>
    %cst_65 = arith.constant 1.000000e+00 : f32
    %137 = vector.broadcast %cst_65 : f32 to vector<8x32xf32>
    %138 = arith.divf %137, %136 : vector<8x32xf32>
    %139 = vector.extract_strided_slice %122 {offsets = [0, 64], sizes = [8, 32], strides = [1, 1]} : vector<8x128xf32> to vector<8x32xf32>
    %140 = math.tanh %139 : vector<8x32xf32>
    %141 = vector.extract_strided_slice %122 {offsets = [0, 96], sizes = [8, 32], strides = [1, 1]} : vector<8x128xf32> to vector<8x32xf32>
    %cst_66 = arith.constant 0.000000e+00 : f32
    %142 = vector.broadcast %cst_66 : f32 to vector<8x32xf32>
    %143 = arith.subf %142, %141 : vector<8x32xf32>
    %144 = math.exp %143 : vector<8x32xf32>
    %cst_67 = arith.constant 1.000000e+00 : f32
    %145 = vector.broadcast %cst_67 : f32 to vector<8x32xf32>
    %146 = arith.addf %145, %144 : vector<8x32xf32>
    %cst_68 = arith.constant 1.000000e+00 : f32
    %147 = vector.broadcast %cst_68 : f32 to vector<8x32xf32>
    %148 = arith.divf %147, %146 : vector<8x32xf32>
    %149 = arith.mulf %138, %116 : vector<8x32xf32>
    %150 = arith.mulf %130, %140 : vector<8x32xf32>
    %151 = arith.addf %149, %150 : vector<8x32xf32>
    %152 = math.tanh %151 : vector<8x32xf32>
    %153 = arith.mulf %148, %152 : vector<8x32xf32>
    %c24_69 = arith.constant 24 : index
    %c0_70 = arith.constant 0 : index
    %154 = vector.load %arg13[%c24_69, %c0_70] : memref<64x32xf32, #tpu.memory_space<vmem>>, vector<8x32xf32>
    tpu.vector_store %arg13[%c24_69, %c0_70], %153 {strides = array<i32>} : memref<64x32xf32, #tpu.memory_space<vmem>>, vector<8x32xf32>,
    %c32 = arith.constant 32 : index
    %c0_71 = arith.constant 0 : index
    %155 = vector.load %arg14[%c32, %c0_71] : memref<64x128xf32, #tpu.memory_space<vmem>>, vector<8x128xf32>
    %cst_72 = arith.constant dense<0.000000e+00> : vector<8x128xf32>
    %156 = tpu.matmul %153, %3, %cst_72 {dimension_numbers = #tpu.dot_dimension_numbers<[1], [0], [0], [1], [0, 0, 1, 1], [], []>} : vector<8x32xf32>, vector<32x128xf32>, vector<8x128xf32> -> vector<8x128xf32>
    %157 = arith.addf %155, %156 : vector<8x128xf32>
    %158 = vector.extract_strided_slice %157 {offsets = [0, 0], sizes = [8, 32], strides = [1, 1]} : vector<8x128xf32> to vector<8x32xf32>
    %cst_73 = arith.constant 0.000000e+00 : f32
    %159 = vector.broadcast %cst_73 : f32 to vector<8x32xf32>
    %160 = arith.subf %159, %158 : vector<8x32xf32>
    %161 = math.exp %160 : vector<8x32xf32>
    %cst_74 = arith.constant 1.000000e+00 : f32
    %162 = vector.broadcast %cst_74 : f32 to vector<8x32xf32>
    %163 = arith.addf %162, %161 : vector<8x32xf32>
    %cst_75 = arith.constant 1.000000e+00 : f32
    %164 = vector.broadcast %cst_75 : f32 to vector<8x32xf32>
    %165 = arith.divf %164, %163 : vector<8x32xf32>
    %166 = vector.extract_strided_slice %157 {offsets = [0, 32], sizes = [8, 32], strides = [1, 1]} : vector<8x128xf32> to vector<8x32xf32>
    %cst_76 = arith.constant 0.000000e+00 : f32
    %167 = vector.broadcast %cst_76 : f32 to vector<8x32xf32>
    %168 = arith.subf %167, %166 : vector<8x32xf32>
    %169 = math.exp %168 : vector<8x32xf32>
    %cst_77 = arith.constant 1.000000e+00 : f32
    %170 = vector.broadcast %cst_77 : f32 to vector<8x32xf32>
    %171 = arith.addf %170, %169 : vector<8x32xf32>
    %cst_78 = arith.constant 1.000000e+00 : f32
    %172 = vector.broadcast %cst_78 : f32 to vector<8x32xf32>
    %173 = arith.divf %172, %171 : vector<8x32xf32>
    %174 = vector.extract_strided_slice %157 {offsets = [0, 64], sizes = [8, 32], strides = [1, 1]} : vector<8x128xf32> to vector<8x32xf32>
    %175 = math.tanh %174 : vector<8x32xf32>
    %176 = vector.extract_strided_slice %157 {offsets = [0, 96], sizes = [8, 32], strides = [1, 1]} : vector<8x128xf32> to vector<8x32xf32>
    %cst_79 = arith.constant 0.000000e+00 : f32
    %177 = vector.broadcast %cst_79 : f32 to vector<8x32xf32>
    %178 = arith.subf %177, %176 : vector<8x32xf32>
    %179 = math.exp %178 : vector<8x32xf32>
    %cst_80 = arith.constant 1.000000e+00 : f32
    %180 = vector.broadcast %cst_80 : f32 to vector<8x32xf32>
    %181 = arith.addf %180, %179 : vector<8x32xf32>
    %cst_81 = arith.constant 1.000000e+00 : f32
    %182 = vector.broadcast %cst_81 : f32 to vector<8x32xf32>
    %183 = arith.divf %182, %181 : vector<8x32xf32>
    %184 = arith.mulf %173, %151 : vector<8x32xf32>
    %185 = arith.mulf %165, %175 : vector<8x32xf32>
    %186 = arith.addf %184, %185 : vector<8x32xf32>
    %187 = math.tanh %186 : vector<8x32xf32>
    %188 = arith.mulf %183, %187 : vector<8x32xf32>
    %c32_82 = arith.constant 32 : index
    %c0_83 = arith.constant 0 : index
    %189 = vector.load %arg13[%c32_82, %c0_83] : memref<64x32xf32, #tpu.memory_space<vmem>>, vector<8x32xf32>
    tpu.vector_store %arg13[%c32_82, %c0_83], %188 {strides = array<i32>} : memref<64x32xf32, #tpu.memory_space<vmem>>, vector<8x32xf32>,
    %c40 = arith.constant 40 : index
    %c0_84 = arith.constant 0 : index
    %190 = vector.load %arg14[%c40, %c0_84] : memref<64x128xf32, #tpu.memory_space<vmem>>, vector<8x128xf32>
    %cst_85 = arith.constant dense<0.000000e+00> : vector<8x128xf32>
    %191 = tpu.matmul %188, %3, %cst_85 {dimension_numbers = #tpu.dot_dimension_numbers<[1], [0], [0], [1], [0, 0, 1, 1], [], []>} : vector<8x32xf32>, vector<32x128xf32>, vector<8x128xf32> -> vector<8x128xf32>
    %192 = arith.addf %190, %191 : vector<8x128xf32>
    %193 = vector.extract_strided_slice %192 {offsets = [0, 0], sizes = [8, 32], strides = [1, 1]} : vector<8x128xf32> to vector<8x32xf32>
    %cst_86 = arith.constant 0.000000e+00 : f32
    %194 = vector.broadcast %cst_86 : f32 to vector<8x32xf32>
    %195 = arith.subf %194, %193 : vector<8x32xf32>
    %196 = math.exp %195 : vector<8x32xf32>
    %cst_87 = arith.constant 1.000000e+00 : f32
    %197 = vector.broadcast %cst_87 : f32 to vector<8x32xf32>
    %198 = arith.addf %197, %196 : vector<8x32xf32>
    %cst_88 = arith.constant 1.000000e+00 : f32
    %199 = vector.broadcast %cst_88 : f32 to vector<8x32xf32>
    %200 = arith.divf %199, %198 : vector<8x32xf32>
    %201 = vector.extract_strided_slice %192 {offsets = [0, 32], sizes = [8, 32], strides = [1, 1]} : vector<8x128xf32> to vector<8x32xf32>
    %cst_89 = arith.constant 0.000000e+00 : f32
    %202 = vector.broadcast %cst_89 : f32 to vector<8x32xf32>
    %203 = arith.subf %202, %201 : vector<8x32xf32>
    %204 = math.exp %203 : vector<8x32xf32>
    %cst_90 = arith.constant 1.000000e+00 : f32
    %205 = vector.broadcast %cst_90 : f32 to vector<8x32xf32>
    %206 = arith.addf %205, %204 : vector<8x32xf32>
    %cst_91 = arith.constant 1.000000e+00 : f32
    %207 = vector.broadcast %cst_91 : f32 to vector<8x32xf32>
    %208 = arith.divf %207, %206 : vector<8x32xf32>
    %209 = vector.extract_strided_slice %192 {offsets = [0, 64], sizes = [8, 32], strides = [1, 1]} : vector<8x128xf32> to vector<8x32xf32>
    %210 = math.tanh %209 : vector<8x32xf32>
    %211 = vector.extract_strided_slice %192 {offsets = [0, 96], sizes = [8, 32], strides = [1, 1]} : vector<8x128xf32> to vector<8x32xf32>
    %cst_92 = arith.constant 0.000000e+00 : f32
    %212 = vector.broadcast %cst_92 : f32 to vector<8x32xf32>
    %213 = arith.subf %212, %211 : vector<8x32xf32>
    %214 = math.exp %213 : vector<8x32xf32>
    %cst_93 = arith.constant 1.000000e+00 : f32
    %215 = vector.broadcast %cst_93 : f32 to vector<8x32xf32>
    %216 = arith.addf %215, %214 : vector<8x32xf32>
    %cst_94 = arith.constant 1.000000e+00 : f32
    %217 = vector.broadcast %cst_94 : f32 to vector<8x32xf32>
    %218 = arith.divf %217, %216 : vector<8x32xf32>
    %219 = arith.mulf %208, %186 : vector<8x32xf32>
    %220 = arith.mulf %200, %210 : vector<8x32xf32>
    %221 = arith.addf %219, %220 : vector<8x32xf32>
    %222 = math.tanh %221 : vector<8x32xf32>
    %223 = arith.mulf %218, %222 : vector<8x32xf32>
    %c40_95 = arith.constant 40 : index
    %c0_96 = arith.constant 0 : index
    %224 = vector.load %arg13[%c40_95, %c0_96] : memref<64x32xf32, #tpu.memory_space<vmem>>, vector<8x32xf32>
    tpu.vector_store %arg13[%c40_95, %c0_96], %223 {strides = array<i32>} : memref<64x32xf32, #tpu.memory_space<vmem>>, vector<8x32xf32>,
    %c48 = arith.constant 48 : index
    %c0_97 = arith.constant 0 : index
    %225 = vector.load %arg14[%c48, %c0_97] : memref<64x128xf32, #tpu.memory_space<vmem>>, vector<8x128xf32>
    %cst_98 = arith.constant dense<0.000000e+00> : vector<8x128xf32>
    %226 = tpu.matmul %223, %3, %cst_98 {dimension_numbers = #tpu.dot_dimension_numbers<[1], [0], [0], [1], [0, 0, 1, 1], [], []>} : vector<8x32xf32>, vector<32x128xf32>, vector<8x128xf32> -> vector<8x128xf32>
    %227 = arith.addf %225, %226 : vector<8x128xf32>
    %228 = vector.extract_strided_slice %227 {offsets = [0, 0], sizes = [8, 32], strides = [1, 1]} : vector<8x128xf32> to vector<8x32xf32>
    %cst_99 = arith.constant 0.000000e+00 : f32
    %229 = vector.broadcast %cst_99 : f32 to vector<8x32xf32>
    %230 = arith.subf %229, %228 : vector<8x32xf32>
    %231 = math.exp %230 : vector<8x32xf32>
    %cst_100 = arith.constant 1.000000e+00 : f32
    %232 = vector.broadcast %cst_100 : f32 to vector<8x32xf32>
    %233 = arith.addf %232, %231 : vector<8x32xf32>
    %cst_101 = arith.constant 1.000000e+00 : f32
    %234 = vector.broadcast %cst_101 : f32 to vector<8x32xf32>
    %235 = arith.divf %234, %233 : vector<8x32xf32>
    %236 = vector.extract_strided_slice %227 {offsets = [0, 32], sizes = [8, 32], strides = [1, 1]} : vector<8x128xf32> to vector<8x32xf32>
    %cst_102 = arith.constant 0.000000e+00 : f32
    %237 = vector.broadcast %cst_102 : f32 to vector<8x32xf32>
    %238 = arith.subf %237, %236 : vector<8x32xf32>
    %239 = math.exp %238 : vector<8x32xf32>
    %cst_103 = arith.constant 1.000000e+00 : f32
    %240 = vector.broadcast %cst_103 : f32 to vector<8x32xf32>
    %241 = arith.addf %240, %239 : vector<8x32xf32>
    %cst_104 = arith.constant 1.000000e+00 : f32
    %242 = vector.broadcast %cst_104 : f32 to vector<8x32xf32>
    %243 = arith.divf %242, %241 : vector<8x32xf32>
    %244 = vector.extract_strided_slice %227 {offsets = [0, 64], sizes = [8, 32], strides = [1, 1]} : vector<8x128xf32> to vector<8x32xf32>
    %245 = math.tanh %244 : vector<8x32xf32>
    %246 = vector.extract_strided_slice %227 {offsets = [0, 96], sizes = [8, 32], strides = [1, 1]} : vector<8x128xf32> to vector<8x32xf32>
    %cst_105 = arith.constant 0.000000e+00 : f32
    %247 = vector.broadcast %cst_105 : f32 to vector<8x32xf32>
    %248 = arith.subf %247, %246 : vector<8x32xf32>
    %249 = math.exp %248 : vector<8x32xf32>
    %cst_106 = arith.constant 1.000000e+00 : f32
    %250 = vector.broadcast %cst_106 : f32 to vector<8x32xf32>
    %251 = arith.addf %250, %249 : vector<8x32xf32>
    %cst_107 = arith.constant 1.000000e+00 : f32
    %252 = vector.broadcast %cst_107 : f32 to vector<8x32xf32>
    %253 = arith.divf %252, %251 : vector<8x32xf32>
    %254 = arith.mulf %243, %221 : vector<8x32xf32>
    %255 = arith.mulf %235, %245 : vector<8x32xf32>
    %256 = arith.addf %254, %255 : vector<8x32xf32>
    %257 = math.tanh %256 : vector<8x32xf32>
    %258 = arith.mulf %253, %257 : vector<8x32xf32>
    %c48_108 = arith.constant 48 : index
    %c0_109 = arith.constant 0 : index
    %259 = vector.load %arg13[%c48_108, %c0_109] : memref<64x32xf32, #tpu.memory_space<vmem>>, vector<8x32xf32>
    tpu.vector_store %arg13[%c48_108, %c0_109], %258 {strides = array<i32>} : memref<64x32xf32, #tpu.memory_space<vmem>>, vector<8x32xf32>,
    %c56 = arith.constant 56 : index
    %c0_110 = arith.constant 0 : index
    %260 = vector.load %arg14[%c56, %c0_110] : memref<64x128xf32, #tpu.memory_space<vmem>>, vector<8x128xf32>
    %cst_111 = arith.constant dense<0.000000e+00> : vector<8x128xf32>
    %261 = tpu.matmul %258, %3, %cst_111 {dimension_numbers = #tpu.dot_dimension_numbers<[1], [0], [0], [1], [0, 0, 1, 1], [], []>} : vector<8x32xf32>, vector<32x128xf32>, vector<8x128xf32> -> vector<8x128xf32>
    %262 = arith.addf %260, %261 : vector<8x128xf32>
    %263 = vector.extract_strided_slice %262 {offsets = [0, 0], sizes = [8, 32], strides = [1, 1]} : vector<8x128xf32> to vector<8x32xf32>
    %cst_112 = arith.constant 0.000000e+00 : f32
    %264 = vector.broadcast %cst_112 : f32 to vector<8x32xf32>
    %265 = arith.subf %264, %263 : vector<8x32xf32>
    %266 = math.exp %265 : vector<8x32xf32>
    %cst_113 = arith.constant 1.000000e+00 : f32
    %267 = vector.broadcast %cst_113 : f32 to vector<8x32xf32>
    %268 = arith.addf %267, %266 : vector<8x32xf32>
    %cst_114 = arith.constant 1.000000e+00 : f32
    %269 = vector.broadcast %cst_114 : f32 to vector<8x32xf32>
    %270 = arith.divf %269, %268 : vector<8x32xf32>
    %271 = vector.extract_strided_slice %262 {offsets = [0, 32], sizes = [8, 32], strides = [1, 1]} : vector<8x128xf32> to vector<8x32xf32>
    %cst_115 = arith.constant 0.000000e+00 : f32
    %272 = vector.broadcast %cst_115 : f32 to vector<8x32xf32>
    %273 = arith.subf %272, %271 : vector<8x32xf32>
    %274 = math.exp %273 : vector<8x32xf32>
    %cst_116 = arith.constant 1.000000e+00 : f32
    %275 = vector.broadcast %cst_116 : f32 to vector<8x32xf32>
    %276 = arith.addf %275, %274 : vector<8x32xf32>
    %cst_117 = arith.constant 1.000000e+00 : f32
    %277 = vector.broadcast %cst_117 : f32 to vector<8x32xf32>
    %278 = arith.divf %277, %276 : vector<8x32xf32>
    %279 = vector.extract_strided_slice %262 {offsets = [0, 64], sizes = [8, 32], strides = [1, 1]} : vector<8x128xf32> to vector<8x32xf32>
    %280 = math.tanh %279 : vector<8x32xf32>
    %281 = vector.extract_strided_slice %262 {offsets = [0, 96], sizes = [8, 32], strides = [1, 1]} : vector<8x128xf32> to vector<8x32xf32>
    %cst_118 = arith.constant 0.000000e+00 : f32
    %282 = vector.broadcast %cst_118 : f32 to vector<8x32xf32>
    %283 = arith.subf %282, %281 : vector<8x32xf32>
    %284 = math.exp %283 : vector<8x32xf32>
    %cst_119 = arith.constant 1.000000e+00 : f32
    %285 = vector.broadcast %cst_119 : f32 to vector<8x32xf32>
    %286 = arith.addf %285, %284 : vector<8x32xf32>
    %cst_120 = arith.constant 1.000000e+00 : f32
    %287 = vector.broadcast %cst_120 : f32 to vector<8x32xf32>
    %288 = arith.divf %287, %286 : vector<8x32xf32>
    %289 = arith.mulf %278, %256 : vector<8x32xf32>
    %290 = arith.mulf %270, %280 : vector<8x32xf32>
    %291 = arith.addf %289, %290 : vector<8x32xf32>
    %292 = math.tanh %291 : vector<8x32xf32>
    %293 = arith.mulf %288, %292 : vector<8x32xf32>
    %c56_121 = arith.constant 56 : index
    %c0_122 = arith.constant 0 : index
    %294 = vector.load %arg13[%c56_121, %c0_122] : memref<64x32xf32, #tpu.memory_space<vmem>>, vector<8x32xf32>
    tpu.vector_store %arg13[%c56_121, %c0_122], %293 {strides = array<i32>} : memref<64x32xf32, #tpu.memory_space<vmem>>, vector<8x32xf32>,
    %c0_123 = arith.constant 0 : index
    %c0_124 = arith.constant 0 : index
    %295 = vector.load %arg13[%c0_123, %c0_124] : memref<64x32xf32, #tpu.memory_space<vmem>>, vector<64x32xf32>
    %c0_125 = arith.constant 0 : index
    %c0_126 = arith.constant 0 : index
    %296 = vector.load %arg6[%c0_125, %c0_126] : memref<32x32xf32, #tpu.memory_space<vmem>>, vector<32x32xf32>
    %cst_127 = arith.constant dense<0.000000e+00> : vector<64x32xf32>
    %297 = tpu.matmul %295, %296, %cst_127 {dimension_numbers = #tpu.dot_dimension_numbers<[1], [0], [0], [1], [0, 0, 1, 1], [], []>} : vector<64x32xf32>, vector<32x32xf32>, vector<64x32xf32> -> vector<64x32xf32>
    %c0_128 = arith.constant 0 : index
    %c0_129 = arith.constant 0 : index
    %298 = vector.load %arg7[%c0_128, %c0_129] : memref<1x32xf32, #tpu.memory_space<vmem>>, vector<1x32xf32>
    %299 = vector.broadcast %298 : vector<1x32xf32> to vector<64x32xf32>
    %300 = arith.addf %297, %299 : vector<64x32xf32>
    %301 = math.tanh %300 : vector<64x32xf32>
    %c0_130 = arith.constant 0 : index
    %c0_131 = arith.constant 0 : index
    %302 = vector.load %arg13[%c0_130, %c0_131] : memref<64x32xf32, #tpu.memory_space<vmem>>, vector<64x32xf32>
    tpu.vector_store %arg13[%c0_130, %c0_131], %301 {strides = array<i32>} : memref<64x32xf32, #tpu.memory_space<vmem>>, vector<64x32xf32>,
    %c0_132 = arith.constant 0 : index
    %c0_133 = arith.constant 0 : index
    %303 = vector.load %arg13[%c0_132, %c0_133] : memref<64x32xf32, #tpu.memory_space<vmem>>, vector<64x32xf32>
    %c0_134 = arith.constant 0 : index
    %c0_135 = arith.constant 0 : index
    %304 = vector.load %arg8[%c0_134, %c0_135] : memref<32x1xf32, #tpu.memory_space<vmem>>, vector<32x1xf32>
    %cst_136 = arith.constant dense<0.000000e+00> : vector<64x1xf32>
    %305 = tpu.matmul %303, %304, %cst_136 {dimension_numbers = #tpu.dot_dimension_numbers<[1], [0], [0], [1], [0, 0, 1, 1], [], []>} : vector<64x32xf32>, vector<32x1xf32>, vector<64x1xf32> -> vector<64x1xf32>
    %c0_137 = arith.constant 0 : index
    %c0_138 = arith.constant 0 : index
    %306 = vector.load %arg11[%c0_137, %c0_138] : memref<64x1xf32, #tpu.memory_space<vmem>>, vector<64x1xf32>
    tpu.vector_store %arg11[%c0_137, %c0_138], %305 {strides = array<i32>} : memref<64x1xf32, #tpu.memory_space<vmem>>, vector<64x1xf32>,
    %c0_139 = arith.constant 0 : index
    %c0_140 = arith.constant 0 : index
    %307 = memref.load %arg10[%c0_139, %c0_140] : memref<1x1xf32, #tpu.memory_space<smem>>
    %c0_141 = arith.constant 0 : index
    %c0_142 = arith.constant 0 : index
    %308 = vector.load %arg9[%c0_141, %c0_142] : memref<32x1xf32, #tpu.memory_space<vmem>>, vector<32x1xf32>
    %cst_143 = arith.constant dense<0.000000e+00> : vector<8x1xf32>
    %309 = tpu.matmul %293, %308, %cst_143 {dimension_numbers = #tpu.dot_dimension_numbers<[1], [0], [0], [1], [0, 0, 1, 1], [], []>} : vector<8x32xf32>, vector<32x1xf32>, vector<8x1xf32> -> vector<8x1xf32>
    %310 = vector.broadcast %307 : f32 to vector<8x1xf32>
    %311 = arith.addf %310, %309 : vector<8x1xf32>
    %c0_144 = arith.constant 0 : index
    %c0_145 = arith.constant 0 : index
    %312 = vector.load %arg11[%c0_144, %c0_145] : memref<64x1xf32, #tpu.memory_space<vmem>>, vector<8x1xf32>
    %313 = arith.addf %312, %311 : vector<8x1xf32>
    %c8_146 = arith.constant 8 : index
    %c0_147 = arith.constant 0 : index
    %314 = vector.load %arg11[%c8_146, %c0_147] : memref<64x1xf32, #tpu.memory_space<vmem>>, vector<8x1xf32>
    %315 = arith.addf %314, %311 : vector<8x1xf32>
    %316 = arith.maximumf %313, %315 : vector<8x1xf32>
    %c16_148 = arith.constant 16 : index
    %c0_149 = arith.constant 0 : index
    %317 = vector.load %arg11[%c16_148, %c0_149] : memref<64x1xf32, #tpu.memory_space<vmem>>, vector<8x1xf32>
    %318 = arith.addf %317, %311 : vector<8x1xf32>
    %319 = arith.maximumf %316, %318 : vector<8x1xf32>
    %c24_150 = arith.constant 24 : index
    %c0_151 = arith.constant 0 : index
    %320 = vector.load %arg11[%c24_150, %c0_151] : memref<64x1xf32, #tpu.memory_space<vmem>>, vector<8x1xf32>
    %321 = arith.addf %320, %311 : vector<8x1xf32>
    %322 = arith.maximumf %319, %321 : vector<8x1xf32>
    %c32_152 = arith.constant 32 : index
    %c0_153 = arith.constant 0 : index
    %323 = vector.load %arg11[%c32_152, %c0_153] : memref<64x1xf32, #tpu.memory_space<vmem>>, vector<8x1xf32>
    %324 = arith.addf %323, %311 : vector<8x1xf32>
    %325 = arith.maximumf %322, %324 : vector<8x1xf32>
    %c40_154 = arith.constant 40 : index
    %c0_155 = arith.constant 0 : index
    %326 = vector.load %arg11[%c40_154, %c0_155] : memref<64x1xf32, #tpu.memory_space<vmem>>, vector<8x1xf32>
    %327 = arith.addf %326, %311 : vector<8x1xf32>
    %328 = arith.maximumf %325, %327 : vector<8x1xf32>
    %c48_156 = arith.constant 48 : index
    %c0_157 = arith.constant 0 : index
    %329 = vector.load %arg11[%c48_156, %c0_157] : memref<64x1xf32, #tpu.memory_space<vmem>>, vector<8x1xf32>
    %330 = arith.addf %329, %311 : vector<8x1xf32>
    %331 = arith.maximumf %328, %330 : vector<8x1xf32>
    %c56_158 = arith.constant 56 : index
    %c0_159 = arith.constant 0 : index
    %332 = vector.load %arg11[%c56_158, %c0_159] : memref<64x1xf32, #tpu.memory_space<vmem>>, vector<8x1xf32>
    %333 = arith.addf %332, %311 : vector<8x1xf32>
    %334 = arith.maximumf %331, %333 : vector<8x1xf32>
    %cst_160 = arith.constant 0.000000e+00 : f32
    %335 = vector.broadcast %cst_160 : f32 to vector<8x1xf32>
    %c0_161 = arith.constant 0 : index
    %c0_162 = arith.constant 0 : index
    %336 = vector.load %arg11[%c0_161, %c0_162] : memref<64x1xf32, #tpu.memory_space<vmem>>, vector<8x1xf32>
    %337 = arith.addf %336, %311 : vector<8x1xf32>
    %338 = arith.subf %337, %334 : vector<8x1xf32>
    %339 = math.exp %338 : vector<8x1xf32>
    %c0_163 = arith.constant 0 : index
    %c0_164 = arith.constant 0 : index
    %340 = vector.load %arg11[%c0_163, %c0_164] : memref<64x1xf32, #tpu.memory_space<vmem>>, vector<8x1xf32>
    tpu.vector_store %arg11[%c0_163, %c0_164], %339 {strides = array<i32>} : memref<64x1xf32, #tpu.memory_space<vmem>>, vector<8x1xf32>,
    %341 = arith.addf %335, %339 : vector<8x1xf32>
    %c8_165 = arith.constant 8 : index
    %c0_166 = arith.constant 0 : index
    %342 = vector.load %arg11[%c8_165, %c0_166] : memref<64x1xf32, #tpu.memory_space<vmem>>, vector<8x1xf32>
    %343 = arith.addf %342, %311 : vector<8x1xf32>
    %344 = arith.subf %343, %334 : vector<8x1xf32>
    %345 = math.exp %344 : vector<8x1xf32>
    %c8_167 = arith.constant 8 : index
    %c0_168 = arith.constant 0 : index
    %346 = vector.load %arg11[%c8_167, %c0_168] : memref<64x1xf32, #tpu.memory_space<vmem>>, vector<8x1xf32>
    tpu.vector_store %arg11[%c8_167, %c0_168], %345 {strides = array<i32>} : memref<64x1xf32, #tpu.memory_space<vmem>>, vector<8x1xf32>,
    %347 = arith.addf %341, %345 : vector<8x1xf32>
    %c16_169 = arith.constant 16 : index
    %c0_170 = arith.constant 0 : index
    %348 = vector.load %arg11[%c16_169, %c0_170] : memref<64x1xf32, #tpu.memory_space<vmem>>, vector<8x1xf32>
    %349 = arith.addf %348, %311 : vector<8x1xf32>
    %350 = arith.subf %349, %334 : vector<8x1xf32>
    %351 = math.exp %350 : vector<8x1xf32>
    %c16_171 = arith.constant 16 : index
    %c0_172 = arith.constant 0 : index
    %352 = vector.load %arg11[%c16_171, %c0_172] : memref<64x1xf32, #tpu.memory_space<vmem>>, vector<8x1xf32>
    tpu.vector_store %arg11[%c16_171, %c0_172], %351 {strides = array<i32>} : memref<64x1xf32, #tpu.memory_space<vmem>>, vector<8x1xf32>,
    %353 = arith.addf %347, %351 : vector<8x1xf32>
    %c24_173 = arith.constant 24 : index
    %c0_174 = arith.constant 0 : index
    %354 = vector.load %arg11[%c24_173, %c0_174] : memref<64x1xf32, #tpu.memory_space<vmem>>, vector<8x1xf32>
    %355 = arith.addf %354, %311 : vector<8x1xf32>
    %356 = arith.subf %355, %334 : vector<8x1xf32>
    %357 = math.exp %356 : vector<8x1xf32>
    %c24_175 = arith.constant 24 : index
    %c0_176 = arith.constant 0 : index
    %358 = vector.load %arg11[%c24_175, %c0_176] : memref<64x1xf32, #tpu.memory_space<vmem>>, vector<8x1xf32>
    tpu.vector_store %arg11[%c24_175, %c0_176], %357 {strides = array<i32>} : memref<64x1xf32, #tpu.memory_space<vmem>>, vector<8x1xf32>,
    %359 = arith.addf %353, %357 : vector<8x1xf32>
    %c32_177 = arith.constant 32 : index
    %c0_178 = arith.constant 0 : index
    %360 = vector.load %arg11[%c32_177, %c0_178] : memref<64x1xf32, #tpu.memory_space<vmem>>, vector<8x1xf32>
    %361 = arith.addf %360, %311 : vector<8x1xf32>
    %362 = arith.subf %361, %334 : vector<8x1xf32>
    %363 = math.exp %362 : vector<8x1xf32>
    %c32_179 = arith.constant 32 : index
    %c0_180 = arith.constant 0 : index
    %364 = vector.load %arg11[%c32_179, %c0_180] : memref<64x1xf32, #tpu.memory_space<vmem>>, vector<8x1xf32>
    tpu.vector_store %arg11[%c32_179, %c0_180], %363 {strides = array<i32>} : memref<64x1xf32, #tpu.memory_space<vmem>>, vector<8x1xf32>,
    %365 = arith.addf %359, %363 : vector<8x1xf32>
    %c40_181 = arith.constant 40 : index
    %c0_182 = arith.constant 0 : index
    %366 = vector.load %arg11[%c40_181, %c0_182] : memref<64x1xf32, #tpu.memory_space<vmem>>, vector<8x1xf32>
    %367 = arith.addf %366, %311 : vector<8x1xf32>
    %368 = arith.subf %367, %334 : vector<8x1xf32>
    %369 = math.exp %368 : vector<8x1xf32>
    %c40_183 = arith.constant 40 : index
    %c0_184 = arith.constant 0 : index
    %370 = vector.load %arg11[%c40_183, %c0_184] : memref<64x1xf32, #tpu.memory_space<vmem>>, vector<8x1xf32>
    tpu.vector_store %arg11[%c40_183, %c0_184], %369 {strides = array<i32>} : memref<64x1xf32, #tpu.memory_space<vmem>>, vector<8x1xf32>,
    %371 = arith.addf %365, %369 : vector<8x1xf32>
    %c48_185 = arith.constant 48 : index
    %c0_186 = arith.constant 0 : index
    %372 = vector.load %arg11[%c48_185, %c0_186] : memref<64x1xf32, #tpu.memory_space<vmem>>, vector<8x1xf32>
    %373 = arith.addf %372, %311 : vector<8x1xf32>
    %374 = arith.subf %373, %334 : vector<8x1xf32>
    %375 = math.exp %374 : vector<8x1xf32>
    %c48_187 = arith.constant 48 : index
    %c0_188 = arith.constant 0 : index
    %376 = vector.load %arg11[%c48_187, %c0_188] : memref<64x1xf32, #tpu.memory_space<vmem>>, vector<8x1xf32>
    tpu.vector_store %arg11[%c48_187, %c0_188], %375 {strides = array<i32>} : memref<64x1xf32, #tpu.memory_space<vmem>>, vector<8x1xf32>,
    %377 = arith.addf %371, %375 : vector<8x1xf32>
    %c56_189 = arith.constant 56 : index
    %c0_190 = arith.constant 0 : index
    %378 = vector.load %arg11[%c56_189, %c0_190] : memref<64x1xf32, #tpu.memory_space<vmem>>, vector<8x1xf32>
    %379 = arith.addf %378, %311 : vector<8x1xf32>
    %380 = arith.subf %379, %334 : vector<8x1xf32>
    %381 = math.exp %380 : vector<8x1xf32>
    %c56_191 = arith.constant 56 : index
    %c0_192 = arith.constant 0 : index
    %382 = vector.load %arg11[%c56_191, %c0_192] : memref<64x1xf32, #tpu.memory_space<vmem>>, vector<8x1xf32>
    tpu.vector_store %arg11[%c56_191, %c0_192], %381 {strides = array<i32>} : memref<64x1xf32, #tpu.memory_space<vmem>>, vector<8x1xf32>,
    %383 = arith.addf %377, %381 : vector<8x1xf32>
    %cst_193 = arith.constant 1.000000e+00 : f32
    %384 = vector.broadcast %cst_193 : f32 to vector<8x1xf32>
    %385 = arith.divf %384, %383 : vector<8x1xf32>
    %cst_194 = arith.constant 0.000000e+00 : f32
    %386 = vector.broadcast %cst_194 : f32 to vector<8x32xf32>
    %c0_195 = arith.constant 0 : index
    %c0_196 = arith.constant 0 : index
    %387 = vector.load %arg11[%c0_195, %c0_196] : memref<64x1xf32, #tpu.memory_space<vmem>>, vector<8x1xf32>
    %388 = arith.mulf %387, %385 : vector<8x1xf32>
    %c0_197 = arith.constant 0 : index
    %c0_198 = arith.constant 0 : index
    %389 = vector.load %arg11[%c0_197, %c0_198] : memref<64x1xf32, #tpu.memory_space<vmem>>, vector<8x1xf32>
    tpu.vector_store %arg11[%c0_197, %c0_198], %388 {strides = array<i32>} : memref<64x1xf32, #tpu.memory_space<vmem>>, vector<8x1xf32>,
    %c0_199 = arith.constant 0 : index
    %c0_200 = arith.constant 0 : index
    %390 = vector.load %arg13[%c0_199, %c0_200] : memref<64x32xf32, #tpu.memory_space<vmem>>, vector<8x32xf32>
    %391 = vector.broadcast %388 : vector<8x1xf32> to vector<8x32xf32>
    %392 = arith.mulf %391, %390 : vector<8x32xf32>
    %393 = arith.addf %386, %392 : vector<8x32xf32>
    %c8_201 = arith.constant 8 : index
    %c0_202 = arith.constant 0 : index
    %394 = vector.load %arg11[%c8_201, %c0_202] : memref<64x1xf32, #tpu.memory_space<vmem>>, vector<8x1xf32>
    %395 = arith.mulf %394, %385 : vector<8x1xf32>
    %c8_203 = arith.constant 8 : index
    %c0_204 = arith.constant 0 : index
    %396 = vector.load %arg11[%c8_203, %c0_204] : memref<64x1xf32, #tpu.memory_space<vmem>>, vector<8x1xf32>
    tpu.vector_store %arg11[%c8_203, %c0_204], %395 {strides = array<i32>} : memref<64x1xf32, #tpu.memory_space<vmem>>, vector<8x1xf32>,
    %c8_205 = arith.constant 8 : index
    %c0_206 = arith.constant 0 : index
    %397 = vector.load %arg13[%c8_205, %c0_206] : memref<64x32xf32, #tpu.memory_space<vmem>>, vector<8x32xf32>
    %398 = vector.broadcast %395 : vector<8x1xf32> to vector<8x32xf32>
    %399 = arith.mulf %398, %397 : vector<8x32xf32>
    %400 = arith.addf %393, %399 : vector<8x32xf32>
    %c16_207 = arith.constant 16 : index
    %c0_208 = arith.constant 0 : index
    %401 = vector.load %arg11[%c16_207, %c0_208] : memref<64x1xf32, #tpu.memory_space<vmem>>, vector<8x1xf32>
    %402 = arith.mulf %401, %385 : vector<8x1xf32>
    %c16_209 = arith.constant 16 : index
    %c0_210 = arith.constant 0 : index
    %403 = vector.load %arg11[%c16_209, %c0_210] : memref<64x1xf32, #tpu.memory_space<vmem>>, vector<8x1xf32>
    tpu.vector_store %arg11[%c16_209, %c0_210], %402 {strides = array<i32>} : memref<64x1xf32, #tpu.memory_space<vmem>>, vector<8x1xf32>,
    %c16_211 = arith.constant 16 : index
    %c0_212 = arith.constant 0 : index
    %404 = vector.load %arg13[%c16_211, %c0_212] : memref<64x32xf32, #tpu.memory_space<vmem>>, vector<8x32xf32>
    %405 = vector.broadcast %402 : vector<8x1xf32> to vector<8x32xf32>
    %406 = arith.mulf %405, %404 : vector<8x32xf32>
    %407 = arith.addf %400, %406 : vector<8x32xf32>
    %c24_213 = arith.constant 24 : index
    %c0_214 = arith.constant 0 : index
    %408 = vector.load %arg11[%c24_213, %c0_214] : memref<64x1xf32, #tpu.memory_space<vmem>>, vector<8x1xf32>
    %409 = arith.mulf %408, %385 : vector<8x1xf32>
    %c24_215 = arith.constant 24 : index
    %c0_216 = arith.constant 0 : index
    %410 = vector.load %arg11[%c24_215, %c0_216] : memref<64x1xf32, #tpu.memory_space<vmem>>, vector<8x1xf32>
    tpu.vector_store %arg11[%c24_215, %c0_216], %409 {strides = array<i32>} : memref<64x1xf32, #tpu.memory_space<vmem>>, vector<8x1xf32>,
    %c24_217 = arith.constant 24 : index
    %c0_218 = arith.constant 0 : index
    %411 = vector.load %arg13[%c24_217, %c0_218] : memref<64x32xf32, #tpu.memory_space<vmem>>, vector<8x32xf32>
    %412 = vector.broadcast %409 : vector<8x1xf32> to vector<8x32xf32>
    %413 = arith.mulf %412, %411 : vector<8x32xf32>
    %414 = arith.addf %407, %413 : vector<8x32xf32>
    %c32_219 = arith.constant 32 : index
    %c0_220 = arith.constant 0 : index
    %415 = vector.load %arg11[%c32_219, %c0_220] : memref<64x1xf32, #tpu.memory_space<vmem>>, vector<8x1xf32>
    %416 = arith.mulf %415, %385 : vector<8x1xf32>
    %c32_221 = arith.constant 32 : index
    %c0_222 = arith.constant 0 : index
    %417 = vector.load %arg11[%c32_221, %c0_222] : memref<64x1xf32, #tpu.memory_space<vmem>>, vector<8x1xf32>
    tpu.vector_store %arg11[%c32_221, %c0_222], %416 {strides = array<i32>} : memref<64x1xf32, #tpu.memory_space<vmem>>, vector<8x1xf32>,
    %c32_223 = arith.constant 32 : index
    %c0_224 = arith.constant 0 : index
    %418 = vector.load %arg13[%c32_223, %c0_224] : memref<64x32xf32, #tpu.memory_space<vmem>>, vector<8x32xf32>
    %419 = vector.broadcast %416 : vector<8x1xf32> to vector<8x32xf32>
    %420 = arith.mulf %419, %418 : vector<8x32xf32>
    %421 = arith.addf %414, %420 : vector<8x32xf32>
    %c40_225 = arith.constant 40 : index
    %c0_226 = arith.constant 0 : index
    %422 = vector.load %arg11[%c40_225, %c0_226] : memref<64x1xf32, #tpu.memory_space<vmem>>, vector<8x1xf32>
    %423 = arith.mulf %422, %385 : vector<8x1xf32>
    %c40_227 = arith.constant 40 : index
    %c0_228 = arith.constant 0 : index
    %424 = vector.load %arg11[%c40_227, %c0_228] : memref<64x1xf32, #tpu.memory_space<vmem>>, vector<8x1xf32>
    tpu.vector_store %arg11[%c40_227, %c0_228], %423 {strides = array<i32>} : memref<64x1xf32, #tpu.memory_space<vmem>>, vector<8x1xf32>,
    %c40_229 = arith.constant 40 : index
    %c0_230 = arith.constant 0 : index
    %425 = vector.load %arg13[%c40_229, %c0_230] : memref<64x32xf32, #tpu.memory_space<vmem>>, vector<8x32xf32>
    %426 = vector.broadcast %423 : vector<8x1xf32> to vector<8x32xf32>
    %427 = arith.mulf %426, %425 : vector<8x32xf32>
    %428 = arith.addf %421, %427 : vector<8x32xf32>
    %c48_231 = arith.constant 48 : index
    %c0_232 = arith.constant 0 : index
    %429 = vector.load %arg11[%c48_231, %c0_232] : memref<64x1xf32, #tpu.memory_space<vmem>>, vector<8x1xf32>
    %430 = arith.mulf %429, %385 : vector<8x1xf32>
    %c48_233 = arith.constant 48 : index
    %c0_234 = arith.constant 0 : index
    %431 = vector.load %arg11[%c48_233, %c0_234] : memref<64x1xf32, #tpu.memory_space<vmem>>, vector<8x1xf32>
    tpu.vector_store %arg11[%c48_233, %c0_234], %430 {strides = array<i32>} : memref<64x1xf32, #tpu.memory_space<vmem>>, vector<8x1xf32>,
    %c48_235 = arith.constant 48 : index
    %c0_236 = arith.constant 0 : index
    %432 = vector.load %arg13[%c48_235, %c0_236] : memref<64x32xf32, #tpu.memory_space<vmem>>, vector<8x32xf32>
    %433 = vector.broadcast %430 : vector<8x1xf32> to vector<8x32xf32>
    %434 = arith.mulf %433, %432 : vector<8x32xf32>
    %435 = arith.addf %428, %434 : vector<8x32xf32>
    %c56_237 = arith.constant 56 : index
    %c0_238 = arith.constant 0 : index
    %436 = vector.load %arg11[%c56_237, %c0_238] : memref<64x1xf32, #tpu.memory_space<vmem>>, vector<8x1xf32>
    %437 = arith.mulf %436, %385 : vector<8x1xf32>
    %c56_239 = arith.constant 56 : index
    %c0_240 = arith.constant 0 : index
    %438 = vector.load %arg11[%c56_239, %c0_240] : memref<64x1xf32, #tpu.memory_space<vmem>>, vector<8x1xf32>
    tpu.vector_store %arg11[%c56_239, %c0_240], %437 {strides = array<i32>} : memref<64x1xf32, #tpu.memory_space<vmem>>, vector<8x1xf32>,
    %c56_241 = arith.constant 56 : index
    %c0_242 = arith.constant 0 : index
    %439 = vector.load %arg13[%c56_241, %c0_242] : memref<64x32xf32, #tpu.memory_space<vmem>>, vector<8x32xf32>
    %440 = vector.broadcast %437 : vector<8x1xf32> to vector<8x32xf32>
    %441 = arith.mulf %440, %439 : vector<8x32xf32>
    %442 = arith.addf %435, %441 : vector<8x32xf32>
    %c0_243 = arith.constant 0 : index
    %c0_244 = arith.constant 0 : index
    %443 = vector.load %arg12[%c0_243, %c0_244] : memref<8x32xf32, #tpu.memory_space<vmem>>, vector<8x32xf32>
    tpu.vector_store %arg12[%c0_243, %c0_244], %442 {strides = array<i32>} : memref<8x32xf32, #tpu.memory_space<vmem>>, vector<8x32xf32>,
    return
  }
}

</mosaic_0001>

<llo_original>
// kernel: _lambda_.1
$region0: #{_lambda_.1}
  #allocation0 [shape = 'u32[]', space=smem, size = 0x4, offset = 0x4, fixed_abs, tag = 'smem constant byte address 0x4 - core index']
  #allocation1 [shape = 'u32[144,128]{1,0:T(1,128)}', space=vmem, size = 0x12000, scoped, tag = 'internal scratch']
  #allocation2 [shape = 'f32[64,32]{1,0:T(8,128)}', space=vmem, size = 0x8000, scoped, tag = 'scratch operand']
  #allocation3 [shape = 'f32[64,128]{1,0:T(8,128)}', space=vmem, size = 0x8000, scoped, tag = 'scratch operand']
  #allocation4 [shape = 'f32[1,1]{1,0:T(1,128)S(6)}', space=smem, size = 0x200, scoped, tag = 'scoped memory for _lambda_.1']
  %s0 = inlined_call_operand.vmem [shape: f32[64,32], index: 0, kind: input, shape index: {}]
  %s1 = inlined_call_operand.vmem [shape: f32[1,8,32], index: 1, kind: input, shape index: {}]
  %s2 = inlined_call_operand.vmem [shape: f32[1,8,32], index: 2, kind: input, shape index: {}]
  %s3 = inlined_call_operand.vmem [shape: f32[1,32,128], index: 3, kind: input, shape index: {}]
  %s4 = inlined_call_operand.vmem [shape: f32[1,32,128], index: 4, kind: input, shape index: {}]
  %s5 = inlined_call_operand.vmem [shape: f32[1,1,128], index: 5, kind: input, shape index: {}]
  %s6 = inlined_call_operand.vmem [shape: f32[32,32], index: 6, kind: input, shape index: {}]
  %s7 = inlined_call_operand.vmem [shape: f32[1,32], index: 7, kind: input, shape index: {}]
  %s8 = inlined_call_operand.vmem [shape: f32[32,1], index: 8, kind: input, shape index: {}]
  %s9 = inlined_call_operand.vmem [shape: f32[32,1], index: 9, kind: input, shape index: {}]
  %s10 = inlined_call_operand.<no memory space> [shape: f32[1,1], index: 10, kind: input, shape index: {}]
  %s11 = inlined_call_operand.vmem [shape: f32[64,1], index: 11, kind: output, shape index: {0}]
  %s12 = inlined_call_operand.vmem [shape: f32[8,32], index: 12, kind: output, shape index: {1}]
  %13 = xla_tuple %s11, %s12
  %s14 = sld [smem:[#allocation0]]
  $region62: #{_lambda_.1} parent=0
    _
  %s16 = ssub.s32 1, %s14
  %s17 = scalar_select 0, %s16, %s14
  %18 = sst [smem:[#allocation4]] %s10
  // Predicated region
  $region2: #{_lambda_.1} parent=0 // pred_check
    _
  $region3: #{_lambda_.1} parent=0 // pred_check_branch
    %20 = sbr.rel (0) target = $region5
  $region4: #{_lambda_.1} parent=0 // pred_region
    _
  $region5: #{_lambda_.1} parent=0 // pred_fallthru
    _
  // Predicated region
  $region6: #{_lambda_.1} parent=0 // pred_check
    _
  $region7: #{_lambda_.1} parent=0 // pred_check_branch
    %22 = sbr.rel (0) target = $region9
  $region8: #{_lambda_.1} parent=0 // pred_region
    _
  $region9: #{_lambda_.1} parent=0 // pred_fallthru
    _
  // Predicated region
  $region10: #{_lambda_.1} parent=0 // pred_check
    _
  $region11: #{_lambda_.1} parent=0 // pred_check_branch
    %24 = sbr.rel (0) target = $region13
  $region12: #{_lambda_.1} parent=0 // pred_region
    _
  $region13: #{_lambda_.1} parent=0 // pred_fallthru
    _
  // Predicated region
  $region14: #{_lambda_.1} parent=0 // pred_check
    _
  $region15: #{_lambda_.1} parent=0 // pred_check_branch
    %26 = sbr.rel (0) target = $region17
  $region16: #{_lambda_.1} parent=0 // pred_region
    _
  $region17: #{_lambda_.1} parent=0 // pred_fallthru
    _
  // Predicated region
  $region18: #{_lambda_.1} parent=0 // pred_check
    _
  $region19: #{_lambda_.1} parent=0 // pred_check_branch
    %28 = sbr.rel (0) target = $region21
  $region20: #{_lambda_.1} parent=0 // pred_region
    _
  $region21: #{_lambda_.1} parent=0 // pred_fallthru
    _
  // Predicated region
  $region22: #{_lambda_.1} parent=0 // pred_check
    _
  $region23: #{_lambda_.1} parent=0 // pred_check_branch
    %30 = sbr.rel (0) target = $region25
  $region24: #{_lambda_.1} parent=0 // pred_region
    _
  $region25: #{_lambda_.1} parent=0 // pred_fallthru
    _
  // Predicated region
  $region26: #{_lambda_.1} parent=0 // pred_check
    _
  $region27: #{_lambda_.1} parent=0 // pred_check_branch
    %32 = sbr.rel (0) target = $region29
  $region28: #{_lambda_.1} parent=0 // pred_region
    _
  $region29: #{_lambda_.1} parent=0 // pred_fallthru
    _
  // Predicated region
  $region30: #{_lambda_.1} parent=0 // pred_check
    _
  $region31: #{_lambda_.1} parent=0 // pred_check_branch
    %34 = sbr.rel (0) target = $region33
  $region32: #{_lambda_.1} parent=0 // pred_region
    _
  $region33: #{_lambda_.1} parent=0 // pred_fallthru
    _
  // Predicated region
  $region34: #{_lambda_.1} parent=0 // pred_check
    _
  $region35: #{_lambda_.1} parent=0 // pred_check_branch
    %36 = sbr.rel (0) target = $region37
  $region36: #{_lambda_.1} parent=0 // pred_region
    _
  $region37: #{_lambda_.1} parent=0 // pred_fallthru
    _
  // Predicated region
  $region38: #{_lambda_.1} parent=0 // pred_check
    _
  $region39: #{_lambda_.1} parent=0 // pred_check_branch
    %38 = sbr.rel (0) target = $region41
  $region40: #{_lambda_.1} parent=0 // pred_region
    _
  $region41: #{_lambda_.1} parent=0 // pred_fallthru
    _
  // Predicated region
  $region42: #{_lambda_.1} parent=0 // pred_check
    _
  $region43: #{_lambda_.1} parent=0 // pred_check_branch
    %40 = sbr.rel (0) target = $region45
  $region44: #{_lambda_.1} parent=0 // pred_region
    _
  $region45: #{_lambda_.1} parent=0 // pred_fallthru
    _
  %v41 = vld [vmem:[%s3] sm:$0xff]
  %v42 = vld [vmem:[%s3 + $0x8] sm:$0xff]
  %v43 = vld [vmem:[%s3 + $0x10] sm:$0xff]
  %v44 = vld [vmem:[%s3 + $0x18] sm:$0xff]
  %v45 = vld [vmem:[%s4] sm:$0xff]
  %v46 = vld [vmem:[%s4 + $0x8] sm:$0xff]
  %v47 = vld [vmem:[%s4 + $0x10] sm:$0xff]
  %v48 = vld [vmem:[%s4 + $0x18] sm:$0xff]
  %v49 = vld [vmem:[%s0] sm:$0xff]
  %v50 = vld [vmem:[%s0 + $0x8] sm:$0xff]
  %v51 = vld [vmem:[%s0 + $0x10] sm:$0xff]
  %v52 = vld [vmem:[%s0 + $0x18] sm:$0xff]
  %v53 = vld [vmem:[%s0 + $0x20] sm:$0xff]
  %v54 = vld [vmem:[%s0 + $0x28] sm:$0xff]
  %v55 = vld [vmem:[%s0 + $0x30] sm:$0xff]
  %v56 = vld [vmem:[%s0 + $0x38] sm:$0xff]
  %v57 = vld [vmem:[%s5] sm:$0x1]
  %v59 = vlaneseq
  %v60 = vshrl.u32 %v59, 7
  %v61 = vsub.s32 0, %v60
  %v62 = vrot.slane %v57, %v61
  %vm64 = vcmask 261120
  %v66 = vsel %vm64, %v49, 0
  %v69 = vsel %vm64, %v50, 0
  %v72 = vsel %vm64, %v51, 0
  %v75 = vsel %vm64, %v52, 0
  %v78 = vsel %vm64, %v53, 0
  %v81 = vsel %vm64, %v54, 0
  %v84 = vsel %vm64, %v55, 0
  %v87 = vsel %vm64, %v56, 0
  %89 = vmatprep.subr.mxu0 0.0
  %90 = vmatpush1.msra.mxu0 0.0
  %91 = vmatprep.subr.mxu0 0.0
  %92 = vmatpush1.msra.mxu0 0.0
  %93 = vmatprep.subr.mxu0 0.0
  %94 = vmatpush1.msra.mxu0 0.0
  %95 = vmatprep.subr.mxu0 0.0
  %96 = vmatpush1.msra.mxu0 0.0
  %97 = vmatprep.subr.mxu0 0.0
  %98 = vmatpush1.msra.mxu0 0.0
  %99 = vmatprep.subr.mxu0 0.0
  %100 = vmatpush1.msra.mxu0 0.0
  %101 = vmatprep.subr.mxu0 0.0
  %102 = vmatpush1.msra.mxu0 0.0
  %103 = vmatprep.subr.mxu0 0.0
  %104 = vmatpush1.msra.mxu0 0.0
  %105 = vmatprep.subr.mxu0 0.0
  %106 = vmatpush1.msra.mxu0 0.0
  %107 = vmatprep.subr.mxu0 0.0
  %108 = vmatpush1.msra.mxu0 0.0
  %109 = vmatprep.subr.mxu0 0.0
  %110 = vmatpush1.msra.mxu0 0.0
  %111 = vmatprep.subr.mxu0 0.0
  %112 = vmatpush1.msra.mxu0 0.0
  %113 = vmatprep.subr.mxu0 0.0
  %114 = vmatpush1.msra.mxu0 %v44
  %115 = vmatprep.subr.mxu0 0.0
  %116 = vmatpush1.msra.mxu0 %v43
  %117 = vmatprep.subr.mxu0 0.0
  %118 = vmatpush1.msra.mxu0 %v42
  %119 = vmatprep.subr.mxu0 0.0
  %120 = vmatpush1.msra.mxu0 %v41
  %121 = vmatprep.subr.mxu0 0.0
  %122 = vmatpush2.msra.mxu0 0.0
  %123 = vmatprep.subr.mxu0 0.0
  %124 = vmatpush2.msra.mxu0 0.0
  %125 = vmatprep.subr.mxu0 0.0
  %126 = vmatpush2.msra.mxu0 0.0
  %127 = vmatprep.subr.mxu0 0.0
  %128 = vmatpush2.msra.mxu0 0.0
  %129 = vmatprep.subr.mxu0 0.0
  %130 = vmatpush2.msra.mxu0 0.0
  %131 = vmatprep.subr.mxu0 0.0
  %132 = vmatpush2.msra.mxu0 0.0
  %133 = vmatprep.subr.mxu0 0.0
  %134 = vmatpush2.msra.mxu0 0.0
  %135 = vmatprep.subr.mxu0 0.0
  %136 = vmatpush2.msra.mxu0 0.0
  %137 = vmatprep.subr.mxu0 0.0
  %138 = vmatpush2.msra.mxu0 0.0
  %139 = vmatprep.subr.mxu0 0.0
  %140 = vmatpush2.msra.mxu0 0.0
  %141 = vmatprep.subr.mxu0 0.0
  %142 = vmatpush2.msra.mxu0 0.0
  %143 = vmatprep.subr.mxu0 0.0
  %144 = vmatpush2.msra.mxu0 0.0
  %145 = vmatprep.subr.mxu0 0.0
  %146 = vmatpush2.msra.mxu0 0.0
  %147 = vmatprep.subr.mxu0 0.0
  %148 = vmatpush2.msra.mxu0 0.0
  %149 = vmatprep.subr.mxu0 0.0
  %150 = vmatpush2.msra.mxu0 0.0
  %151 = vmatprep.subr.mxu0 0.0
  %152 = vmatpush2.msra.mxu0 0.0
  %153 = vmatprep.mubr.f32.mxu0 0.0
  %154 = vmatmul.mubr.f32.gmra.mxu0 %v66
  %v155 = vpop.f32.mrf.mxu0
  %v156 = vadd.f32 %v62, %v155
  %v157 = vpop.f32.mrf.mxu0
  %158 = vmatprep.mubr.f32.mxu0 0.0
  %159 = vmatmul.mubr.f32.gmra.mxu0 %v69
  %v160 = vpop.f32.mrf.mxu0
  %v161 = vadd.f32 %v62, %v160
  %v162 = vpop.f32.mrf.mxu0
  %163 = vmatprep.mubr.f32.mxu0 0.0
  %164 = vmatmul.mubr.f32.gmra.mxu0 %v72
  %v165 = vpop.f32.mrf.mxu0
  %v166 = vadd.f32 %v62, %v165
  %v167 = vpop.f32.mrf.mxu0
  %168 = vmatprep.mubr.f32.mxu0 0.0
  %169 = vmatmul.mubr.f32.gmra.mxu0 %v75
  %v170 = vpop.f32.mrf.mxu0
  %v171 = vadd.f32 %v62, %v170
  %v172 = vpop.f32.mrf.mxu0
  %173 = vmatprep.mubr.f32.mxu0 0.0
  %174 = vmatmul.mubr.f32.gmra.mxu0 %v78
  %v175 = vpop.f32.mrf.mxu0
  %v176 = vadd.f32 %v62, %v175
  %v177 = vpop.f32.mrf.mxu0
  %178 = vmatprep.mubr.f32.mxu0 0.0
  %179 = vmatmul.mubr.f32.gmra.mxu0 %v81
  %v180 = vpop.f32.mrf.mxu0
  %v181 = vadd.f32 %v62, %v180
  %v182 = vpop.f32.mrf.mxu0
  %183 = vmatprep.mubr.f32.mxu0 0.0
  %184 = vmatmul.mubr.f32.gmra.mxu0 %v84
  %v185 = vpop.f32.mrf.mxu0
  %v186 = vadd.f32 %v62, %v185
  %v187 = vpop.f32.mrf.mxu0
  %188 = vmatprep.mubr.f32.mxu0 0.0
  %189 = vmatmul.mubr.f32.gmra.mxu0 %v87
  %v190 = vpop.f32.mrf.mxu0
  %v191 = vadd.f32 %v62, %v190
  %v192 = vpop.f32.mrf.mxu0
  %193 = vdwg.mxu0
  %194 = vst [vmem:[#allocation3] sm:$0xff] %v156
  %195 = vst [vmem:[#allocation3 + $0x8] sm:$0xff] %v161
  %196 = vst [vmem:[#allocation3 + $0x10] sm:$0xff] %v166
  %197 = vst [vmem:[#allocation3 + $0x18] sm:$0xff] %v171
  %198 = vst [vmem:[#allocation3 + $0x20] sm:$0xff] %v176
  %199 = vst [vmem:[#allocation3 + $0x28] sm:$0xff] %v181
  %200 = vst [vmem:[#allocation3 + $0x30] sm:$0xff] %v186
  %201 = vst [vmem:[#allocation3 + $0x38] sm:$0xff] %v191
  %v202 = vld [vmem:[%s1] sm:$0xff]
  %v203 = vld [vmem:[%s2] sm:$0xff]
  %v204 = vld [vmem:[#allocation3] sm:$0xff]
  %v206 = vsel %vm64, %v202, 0
  %208 = vmatprep.subr.mxu0 0.0
  %209 = vmatpush1.msra.mxu0 0.0
  %210 = vmatprep.subr.mxu0 0.0
  %211 = vmatpush1.msra.mxu0 0.0
  %212 = vmatprep.subr.mxu0 0.0
  %213 = vmatpush1.msra.mxu0 0.0
  %214 = vmatprep.subr.mxu0 0.0
  %215 = vmatpush1.msra.mxu0 0.0
  %216 = vmatprep.subr.mxu0 0.0
  %217 = vmatpush1.msra.mxu0 0.0
  %218 = vmatprep.subr.mxu0 0.0
  %219 = vmatpush1.msra.mxu0 0.0
  %220 = vmatprep.subr.mxu0 0.0
  %221 = vmatpush1.msra.mxu0 0.0
  %222 = vmatprep.subr.mxu0 0.0
  %223 = vmatpush1.msra.mxu0 0.0
  %224 = vmatprep.subr.mxu0 0.0
  %225 = vmatpush1.msra.mxu0 0.0
  %226 = vmatprep.subr.mxu0 0.0
  %227 = vmatpush1.msra.mxu0 0.0
  %228 = vmatprep.subr.mxu0 0.0
  %229 = vmatpush1.msra.mxu0 0.0
  %230 = vmatprep.subr.mxu0 0.0
  %231 = vmatpush1.msra.mxu0 0.0
  %232 = vmatprep.subr.mxu0 0.0
  %233 = vmatpush1.msra.mxu0 %v48
  %234 = vmatprep.subr.mxu0 0.0
  %235 = vmatpush1.msra.mxu0 %v47
  %236 = vmatprep.subr.mxu0 0.0
  %237 = vmatpush1.msra.mxu0 %v46
  %238 = vmatprep.subr.mxu0 0.0
  %239 = vmatpush1.msra.mxu0 %v45
  %240 = vmatprep.subr.mxu0 0.0
  %241 = vmatpush2.msra.mxu0 0.0
  %242 = vmatprep.subr.mxu0 0.0
  %243 = vmatpush2.msra.mxu0 0.0
  %244 = vmatprep.subr.mxu0 0.0
  %245 = vmatpush2.msra.mxu0 0.0
  %246 = vmatprep.subr.mxu0 0.0
  %247 = vmatpush2.msra.mxu0 0.0
  %248 = vmatprep.subr.mxu0 0.0
  %249 = vmatpush2.msra.mxu0 0.0
  %250 = vmatprep.subr.mxu0 0.0
  %251 = vmatpush2.msra.mxu0 0.0
  %252 = vmatprep.subr.mxu0 0.0
  %253 = vmatpush2.msra.mxu0 0.0
  %254 = vmatprep.subr.mxu0 0.0
  %255 = vmatpush2.msra.mxu0 0.0
  %256 = vmatprep.subr.mxu0 0.0
  %257 = vmatpush2.msra.mxu0 0.0
  %258 = vmatprep.subr.mxu0 0.0
  %259 = vmatpush2.msra.mxu0 0.0
  %260 = vmatprep.subr.mxu0 0.0
  %261 = vmatpush2.msra.mxu0 0.0
  %262 = vmatprep.subr.mxu0 0.0
  %263 = vmatpush2.msra.mxu0 0.0
  %264 = vmatprep.subr.mxu0 0.0
  %265 = vmatpush2.msra.mxu0 0.0
  %266 = vmatprep.subr.mxu0 0.0
  %267 = vmatpush2.msra.mxu0 0.0
  %268 = vmatprep.subr.mxu0 0.0
  %269 = vmatpush2.msra.mxu0 0.0
  %270 = vmatprep.subr.mxu0 0.0
  %271 = vmatpush2.msra.mxu0 0.0
  %272 = vmatprep.mubr.f32.mxu0 0.0
  %273 = vmatmul.mubr.f32.gmra.mxu0 %v206
  %v274 = vpop.f32.mrf.mxu0
  %v275 = vadd.f32 0.0, %v274
  %v276 = vpop.f32.mrf.mxu0
  %277 = vdwg.mxu0
  %v278 = vadd.f32 %v204, %v275
  %v279 = vsub.f32 0.0, %v278
  %v280 = vmul.f32 %v279, 1.442695
  %v281 = vpow.pop %v280
  %v282 = vadd.f32 %v281, 1.0
  %v283 = vrcp.pop %v282
  %v284 = vmul.f32 1.0, %v283
  %v285 = vtanh.pop %v278
  %287 = vrot.lane.b32.xlu0 %v203, 32
  %v288 = vpop.permute.xlu0 %287
  %v290 = vmul.f32 %v284, %v288
  %292 = vrot.lane.b32.xlu0 %v285, 64
  %v293 = vpop.permute.xlu0 %292
  %v295 = vmul.f32 %v284, %v293
  %297 = vrot.lane.b32.xlu0 %v295, 32
  %v298 = vpop.permute.xlu0 %297
  %v300 = vadd.f32 %v290, %v298
  %v301 = vtanh.pop %v300
  %303 = vrot.lane.b32.xlu0 %v301, 64
  %v304 = vpop.permute.xlu0 %303
  %v306 = vmul.f32 %v284, %v304
  %308 = vrot.lane.b32.xlu0 %v306, 32
  %v309 = vpop.permute.xlu0 %308
  %311 = vst.msk [vmem:[#allocation2] sm:$0xff] %vm64, %v309
  %v312 = vld [vmem:[#allocation3 + $0x8] sm:$0xff]
  %v313 = vsel %vm64, %v309, 0
  %315 = vmatprep.subr.mxu0 0.0
  %316 = vmatpush1.msra.mxu0 0.0
  %317 = vmatprep.subr.mxu0 0.0
  %318 = vmatpush1.msra.mxu0 0.0
  %319 = vmatprep.subr.mxu0 0.0
  %320 = vmatpush1.msra.mxu0 0.0
  %321 = vmatprep.subr.mxu0 0.0
  %322 = vmatpush1.msra.mxu0 0.0
  %323 = vmatprep.subr.mxu0 0.0
  %324 = vmatpush1.msra.mxu0 0.0
  %325 = vmatprep.subr.mxu0 0.0
  %326 = vmatpush1.msra.mxu0 0.0
  %327 = vmatprep.subr.mxu0 0.0
  %328 = vmatpush1.msra.mxu0 0.0
  %329 = vmatprep.subr.mxu0 0.0
  %330 = vmatpush1.msra.mxu0 0.0
  %331 = vmatprep.subr.mxu0 0.0
  %332 = vmatpush1.msra.mxu0 0.0
  %333 = vmatprep.subr.mxu0 0.0
  %334 = vmatpush1.msra.mxu0 0.0
  %335 = vmatprep.subr.mxu0 0.0
  %336 = vmatpush1.msra.mxu0 0.0
  %337 = vmatprep.subr.mxu0 0.0
  %338 = vmatpush1.msra.mxu0 0.0
  %339 = vmatprep.subr.mxu0 0.0
  %340 = vmatpush1.msra.mxu0 %v48
  %341 = vmatprep.subr.mxu0 0.0
  %342 = vmatpush1.msra.mxu0 %v47
  %343 = vmatprep.subr.mxu0 0.0
  %344 = vmatpush1.msra.mxu0 %v46
  %345 = vmatprep.subr.mxu0 0.0
  %346 = vmatpush1.msra.mxu0 %v45
  %347 = vmatprep.subr.mxu0 0.0
  %348 = vmatpush2.msra.mxu0 0.0
  %349 = vmatprep.subr.mxu0 0.0
  %350 = vmatpush2.msra.mxu0 0.0
  %351 = vmatprep.subr.mxu0 0.0
  %352 = vmatpush2.msra.mxu0 0.0
  %353 = vmatprep.subr.mxu0 0.0
  %354 = vmatpush2.msra.mxu0 0.0
  %355 = vmatprep.subr.mxu0 0.0
  %356 = vmatpush2.msra.mxu0 0.0
  %357 = vmatprep.subr.mxu0 0.0
  %358 = vmatpush2.msra.mxu0 0.0
  %359 = vmatprep.subr.mxu0 0.0
  %360 = vmatpush2.msra.mxu0 0.0
  %361 = vmatprep.subr.mxu0 0.0
  %362 = vmatpush2.msra.mxu0 0.0
  %363 = vmatprep.subr.mxu0 0.0
  %364 = vmatpush2.msra.mxu0 0.0
  %365 = vmatprep.subr.mxu0 0.0
  %366 = vmatpush2.msra.mxu0 0.0
  %367 = vmatprep.subr.mxu0 0.0
  %368 = vmatpush2.msra.mxu0 0.0
  %369 = vmatprep.subr.mxu0 0.0
  %370 = vmatpush2.msra.mxu0 0.0
  %371 = vmatprep.subr.mxu0 0.0
  %372 = vmatpush2.msra.mxu0 0.0
  %373 = vmatprep.subr.mxu0 0.0
  %374 = vmatpush2.msra.mxu0 0.0
  %375 = vmatprep.subr.mxu0 0.0
  %376 = vmatpush2.msra.mxu0 0.0
  %377 = vmatprep.subr.mxu0 0.0
  %378 = vmatpush2.msra.mxu0 0.0
  %379 = vmatprep.mubr.f32.mxu0 0.0
  %380 = vmatmul.mubr.f32.gmra.mxu0 %v313
  %v381 = vpop.f32.mrf.mxu0
  %v382 = vadd.f32 0.0, %v381
  %v383 = vpop.f32.mrf.mxu0
  %384 = vdwg.mxu0
  %v385 = vadd.f32 %v312, %v382
  %v386 = vsub.f32 0.0, %v385
  %v387 = vmul.f32 %v386, 1.442695
  %v388 = vpow.pop %v387
  %v389 = vadd.f32 %v388, 1.0
  %v390 = vrcp.pop %v389
  %v391 = vmul.f32 1.0, %v390
  %v392 = vtanh.pop %v385
  %v393 = vmul.f32 %v391, %v300
  %395 = vrot.lane.b32.xlu0 %v392, 64
  %v396 = vpop.permute.xlu0 %395
  %v398 = vmul.f32 %v391, %v396
  %400 = vrot.lane.b32.xlu0 %v398, 32
  %v401 = vpop.permute.xlu0 %400
  %v403 = vadd.f32 %v393, %v401
  %v404 = vtanh.pop %v403
  %406 = vrot.lane.b32.xlu0 %v404, 64
  %v407 = vpop.permute.xlu0 %406
  %v409 = vmul.f32 %v391, %v407
  %411 = vrot.lane.b32.xlu0 %v409, 32
  %v412 = vpop.permute.xlu0 %411
  %414 = vst.msk [vmem:[#allocation2 + $0x8] sm:$0xff] %vm64, %v412
  %v415 = vld [vmem:[#allocation3 + $0x10] sm:$0xff]
  %v416 = vsel %vm64, %v412, 0
  %418 = vmatprep.subr.mxu0 0.0
  %419 = vmatpush1.msra.mxu0 0.0
  %420 = vmatprep.subr.mxu0 0.0
  %421 = vmatpush1.msra.mxu0 0.0
  %422 = vmatprep.subr.mxu0 0.0
  %423 = vmatpush1.msra.mxu0 0.0
  %424 = vmatprep.subr.mxu0 0.0
  %425 = vmatpush1.msra.mxu0 0.0
  %426 = vmatprep.subr.mxu0 0.0
  %427 = vmatpush1.msra.mxu0 0.0
  %428 = vmatprep.subr.mxu0 0.0
  %429 = vmatpush1.msra.mxu0 0.0
  %430 = vmatprep.subr.mxu0 0.0
  %431 = vmatpush1.msra.mxu0 0.0
  %432 = vmatprep.subr.mxu0 0.0
  %433 = vmatpush1.msra.mxu0 0.0
  %434 = vmatprep.subr.mxu0 0.0
  %435 = vmatpush1.msra.mxu0 0.0
  %436 = vmatprep.subr.mxu0 0.0
  %437 = vmatpush1.msra.mxu0 0.0
  %438 = vmatprep.subr.mxu0 0.0
  %439 = vmatpush1.msra.mxu0 0.0
  %440 = vmatprep.subr.mxu0 0.0
  %441 = vmatpush1.msra.mxu0 0.0
  %442 = vmatprep.subr.mxu0 0.0
  %443 = vmatpush1.msra.mxu0 %v48
  %444 = vmatprep.subr.mxu0 0.0
  %445 = vmatpush1.msra.mxu0 %v47
  %446 = vmatprep.subr.mxu0 0.0
  %447 = vmatpush1.msra.mxu0 %v46
  %448 = vmatprep.subr.mxu0 0.0
  %449 = vmatpush1.msra.mxu0 %v45
  %450 = vmatprep.subr.mxu0 0.0
  %451 = vmatpush2.msra.mxu0 0.0
  %452 = vmatprep.subr.mxu0 0.0
  %453 = vmatpush2.msra.mxu0 0.0
  %454 = vmatprep.subr.mxu0 0.0
  %455 = vmatpush2.msra.mxu0 0.0
  %456 = vmatprep.subr.mxu0 0.0
  %457 = vmatpush2.msra.mxu0 0.0
  %458 = vmatprep.subr.mxu0 0.0
  %459 = vmatpush2.msra.mxu0 0.0
  %460 = vmatprep.subr.mxu0 0.0
  %461 = vmatpush2.msra.mxu0 0.0
  %462 = vmatprep.subr.mxu0 0.0
  %463 = vmatpush2.msra.mxu0 0.0
  %464 = vmatprep.subr.mxu0 0.0
  %465 = vmatpush2.msra.mxu0 0.0
  %466 = vmatprep.subr.mxu0 0.0
  %467 = vmatpush2.msra.mxu0 0.0
  %468 = vmatprep.subr.mxu0 0.0
  %469 = vmatpush2.msra.mxu0 0.0
  %470 = vmatprep.subr.mxu0 0.0
  %471 = vmatpush2.msra.mxu0 0.0
  %472 = vmatprep.subr.mxu0 0.0
  %473 = vmatpush2.msra.mxu0 0.0
  %474 = vmatprep.subr.mxu0 0.0
  %475 = vmatpush2.msra.mxu0 0.0
  %476 = vmatprep.subr.mxu0 0.0
  %477 = vmatpush2.msra.mxu0 0.0
  %478 = vmatprep.subr.mxu0 0.0
  %479 = vmatpush2.msra.mxu0 0.0
  %480 = vmatprep.subr.mxu0 0.0
  %481 = vmatpush2.msra.mxu0 0.0
  %482 = vmatprep.mubr.f32.mxu0 0.0
  %483 = vmatmul.mubr.f32.gmra.mxu0 %v416
  %v484 = vpop.f32.mrf.mxu0
  %v485 = vadd.f32 0.0, %v484
  %v486 = vpop.f32.mrf.mxu0
  %487 = vdwg.mxu0
  %v488 = vadd.f32 %v415, %v485
  %v489 = vsub.f32 0.0, %v488
  %v490 = vmul.f32 %v489, 1.442695
  %v491 = vpow.pop %v490
  %v492 = vadd.f32 %v491, 1.0
  %v493 = vrcp.pop %v492
  %v494 = vmul.f32 1.0, %v493
  %v495 = vtanh.pop %v488
  %v496 = vmul.f32 %v494, %v403
  %498 = vrot.lane.b32.xlu0 %v495, 64
  %v499 = vpop.permute.xlu0 %498
  %v501 = vmul.f32 %v494, %v499
  %503 = vrot.lane.b32.xlu0 %v501, 32
  %v504 = vpop.permute.xlu0 %503
  %v506 = vadd.f32 %v496, %v504
  %v507 = vtanh.pop %v506
  %509 = vrot.lane.b32.xlu0 %v507, 64
  %v510 = vpop.permute.xlu0 %509
  %v512 = vmul.f32 %v494, %v510
  %514 = vrot.lane.b32.xlu0 %v512, 32
  %v515 = vpop.permute.xlu0 %514
  %517 = vst.msk [vmem:[#allocation2 + $0x10] sm:$0xff] %vm64, %v515
  %v518 = vld [vmem:[#allocation3 + $0x18] sm:$0xff]
  %v519 = vsel %vm64, %v515, 0
  %521 = vmatprep.subr.mxu0 0.0
  %522 = vmatpush1.msra.mxu0 0.0
  %523 = vmatprep.subr.mxu0 0.0
  %524 = vmatpush1.msra.mxu0 0.0
  %525 = vmatprep.subr.mxu0 0.0
  %526 = vmatpush1.msra.mxu0 0.0
  %527 = vmatprep.subr.mxu0 0.0
  %528 = vmatpush1.msra.mxu0 0.0
  %529 = vmatprep.subr.mxu0 0.0
  %530 = vmatpush1.msra.mxu0 0.0
  %531 = vmatprep.subr.mxu0 0.0
  %532 = vmatpush1.msra.mxu0 0.0
  %533 = vmatprep.subr.mxu0 0.0
  %534 = vmatpush1.msra.mxu0 0.0
  %535 = vmatprep.subr.mxu0 0.0
  %536 = vmatpush1.msra.mxu0 0.0
  %537 = vmatprep.subr.mxu0 0.0
  %538 = vmatpush1.msra.mxu0 0.0
  %539 = vmatprep.subr.mxu0 0.0
  %540 = vmatpush1.msra.mxu0 0.0
  %541 = vmatprep.subr.mxu0 0.0
  %542 = vmatpush1.msra.mxu0 0.0
  %543 = vmatprep.subr.mxu0 0.0
  %544 = vmatpush1.msra.mxu0 0.0
  %545 = vmatprep.subr.mxu0 0.0
  %546 = vmatpush1.msra.mxu0 %v48
  %547 = vmatprep.subr.mxu0 0.0
  %548 = vmatpush1.msra.mxu0 %v47
  %549 = vmatprep.subr.mxu0 0.0
  %550 = vmatpush1.msra.mxu0 %v46
  %551 = vmatprep.subr.mxu0 0.0
  %552 = vmatpush1.msra.mxu0 %v45
  %553 = vmatprep.subr.mxu0 0.0
  %554 = vmatpush2.msra.mxu0 0.0
  %555 = vmatprep.subr.mxu0 0.0
  %556 = vmatpush2.msra.mxu0 0.0
  %557 = vmatprep.subr.mxu0 0.0
  %558 = vmatpush2.msra.mxu0 0.0
  %559 = vmatprep.subr.mxu0 0.0
  %560 = vmatpush2.msra.mxu0 0.0
  %561 = vmatprep.subr.mxu0 0.0
  %562 = vmatpush2.msra.mxu0 0.0
  %563 = vmatprep.subr.mxu0 0.0
  %564 = vmatpush2.msra.mxu0 0.0
  %565 = vmatprep.subr.mxu0 0.0
  %566 = vmatpush2.msra.mxu0 0.0
  %567 = vmatprep.subr.mxu0 0.0
  %568 = vmatpush2.msra.mxu0 0.0
  %569 = vmatprep.subr.mxu0 0.0
  %570 = vmatpush2.msra.mxu0 0.0
  %571 = vmatprep.subr.mxu0 0.0
  %572 = vmatpush2.msra.mxu0 0.0
  %573 = vmatprep.subr.mxu0 0.0
  %574 = vmatpush2.msra.mxu0 0.0
  %575 = vmatprep.subr.mxu0 0.0
  %576 = vmatpush2.msra.mxu0 0.0
  %577 = vmatprep.subr.mxu0 0.0
  %578 = vmatpush2.msra.mxu0 0.0
  %579 = vmatprep.subr.mxu0 0.0
  %580 = vmatpush2.msra.mxu0 0.0
  %581 = vmatprep.subr.mxu0 0.0
  %582 = vmatpush2.msra.mxu0 0.0
  %583 = vmatprep.subr.mxu0 0.0
  %584 = vmatpush2.msra.mxu0 0.0
  %585 = vmatprep.mubr.f32.mxu0 0.0
  %586 = vmatmul.mubr.f32.gmra.mxu0 %v519
  %v587 = vpop.f32.mrf.mxu0
  %v588 = vadd.f32 0.0, %v587
  %v589 = vpop.f32.mrf.mxu0
  %590 = vdwg.mxu0
  %v591 = vadd.f32 %v518, %v588
  %v592 = vsub.f32 0.0, %v591
  %v593 = vmul.f32 %v592, 1.442695
  %v594 = vpow.pop %v593
  %v595 = vadd.f32 %v594, 1.0
  %v596 = vrcp.pop %v595
  %v597 = vmul.f32 1.0, %v596
  %v598 = vtanh.pop %v591
  %v599 = vmul.f32 %v597, %v506
  %601 = vrot.lane.b32.xlu0 %v598, 64
  %v602 = vpop.permute.xlu0 %601
  %v604 = vmul.f32 %v597, %v602
  %606 = vrot.lane.b32.xlu0 %v604, 32
  %v607 = vpop.permute.xlu0 %606
  %v609 = vadd.f32 %v599, %v607
  %v610 = vtanh.pop %v609
  %612 = vrot.lane.b32.xlu0 %v610, 64
  %v613 = vpop.permute.xlu0 %612
  %v615 = vmul.f32 %v597, %v613
  %617 = vrot.lane.b32.xlu0 %v615, 32
  %v618 = vpop.permute.xlu0 %617
  %620 = vst.msk [vmem:[#allocation2 + $0x18] sm:$0xff] %vm64, %v618
  %v621 = vld [vmem:[#allocation3 + $0x20] sm:$0xff]
  %v622 = vsel %vm64, %v618, 0
  %624 = vmatprep.subr.mxu0 0.0
  %625 = vmatpush1.msra.mxu0 0.0
  %626 = vmatprep.subr.mxu0 0.0
  %627 = vmatpush1.msra.mxu0 0.0
  %628 = vmatprep.subr.mxu0 0.0
  %629 = vmatpush1.msra.mxu0 0.0
  %630 = vmatprep.subr.mxu0 0.0
  %631 = vmatpush1.msra.mxu0 0.0
  %632 = vmatprep.subr.mxu0 0.0
  %633 = vmatpush1.msra.mxu0 0.0
  %634 = vmatprep.subr.mxu0 0.0
  %635 = vmatpush1.msra.mxu0 0.0
  %636 = vmatprep.subr.mxu0 0.0
  %637 = vmatpush1.msra.mxu0 0.0
  %638 = vmatprep.subr.mxu0 0.0
  %639 = vmatpush1.msra.mxu0 0.0
  %640 = vmatprep.subr.mxu0 0.0
  %641 = vmatpush1.msra.mxu0 0.0
  %642 = vmatprep.subr.mxu0 0.0
  %643 = vmatpush1.msra.mxu0 0.0
  %644 = vmatprep.subr.mxu0 0.0
  %645 = vmatpush1.msra.mxu0 0.0
  %646 = vmatprep.subr.mxu0 0.0
  %647 = vmatpush1.msra.mxu0 0.0
  %648 = vmatprep.subr.mxu0 0.0
  %649 = vmatpush1.msra.mxu0 %v48
  %650 = vmatprep.subr.mxu0 0.0
  %651 = vmatpush1.msra.mxu0 %v47
  %652 = vmatprep.subr.mxu0 0.0
  %653 = vmatpush1.msra.mxu0 %v46
  %654 = vmatprep.subr.mxu0 0.0
  %655 = vmatpush1.msra.mxu0 %v45
  %656 = vmatprep.subr.mxu0 0.0
  %657 = vmatpush2.msra.mxu0 0.0
  %658 = vmatprep.subr.mxu0 0.0
  %659 = vmatpush2.msra.mxu0 0.0
  %660 = vmatprep.subr.mxu0 0.0
  %661 = vmatpush2.msra.mxu0 0.0
  %662 = vmatprep.subr.mxu0 0.0
  %663 = vmatpush2.msra.mxu0 0.0
  %664 = vmatprep.subr.mxu0 0.0
  %665 = vmatpush2.msra.mxu0 0.0
  %666 = vmatprep.subr.mxu0 0.0
  %667 = vmatpush2.msra.mxu0 0.0
  %668 = vmatprep.subr.mxu0 0.0
  %669 = vmatpush2.msra.mxu0 0.0
  %670 = vmatprep.subr.mxu0 0.0
  %671 = vmatpush2.msra.mxu0 0.0
  %672 = vmatprep.subr.mxu0 0.0
  %673 = vmatpush2.msra.mxu0 0.0
  %674 = vmatprep.subr.mxu0 0.0
  %675 = vmatpush2.msra.mxu0 0.0
  %676 = vmatprep.subr.mxu0 0.0
  %677 = vmatpush2.msra.mxu0 0.0
  %678 = vmatprep.subr.mxu0 0.0
  %679 = vmatpush2.msra.mxu0 0.0
  %680 = vmatprep.subr.mxu0 0.0
  %681 = vmatpush2.msra.mxu0 0.0
  %682 = vmatprep.subr.mxu0 0.0
  %683 = vmatpush2.msra.mxu0 0.0
  %684 = vmatprep.subr.mxu0 0.0
  %685 = vmatpush2.msra.mxu0 0.0
  %686 = vmatprep.subr.mxu0 0.0
  %687 = vmatpush2.msra.mxu0 0.0
  %688 = vmatprep.mubr.f32.mxu0 0.0
  %689 = vmatmul.mubr.f32.gmra.mxu0 %v622
  %v690 = vpop.f32.mrf.mxu0
  %v691 = vadd.f32 0.0, %v690
  %v692 = vpop.f32.mrf.mxu0
  %693 = vdwg.mxu0
  %v694 = vadd.f32 %v621, %v691
  %v695 = vsub.f32 0.0, %v694
  %v696 = vmul.f32 %v695, 1.442695
  %v697 = vpow.pop %v696
  %v698 = vadd.f32 %v697, 1.0
  %v699 = vrcp.pop %v698
  %v700 = vmul.f32 1.0, %v699
  %v701 = vtanh.pop %v694
  %v702 = vmul.f32 %v700, %v609
  %704 = vrot.lane.b32.xlu0 %v701, 64
  %v705 = vpop.permute.xlu0 %704
  %v707 = vmul.f32 %v700, %v705
  %709 = vrot.lane.b32.xlu0 %v707, 32
  %v710 = vpop.permute.xlu0 %709
  %v712 = vadd.f32 %v702, %v710
  %v713 = vtanh.pop %v712
  %715 = vrot.lane.b32.xlu0 %v713, 64
  %v716 = vpop.permute.xlu0 %715
  %v718 = vmul.f32 %v700, %v716
  %720 = vrot.lane.b32.xlu0 %v718, 32
  %v721 = vpop.permute.xlu0 %720
  %723 = vst.msk [vmem:[#allocation2 + $0x20] sm:$0xff] %vm64, %v721
  %v724 = vld [vmem:[#allocation3 + $0x28] sm:$0xff]
  %v725 = vsel %vm64, %v721, 0
  %727 = vmatprep.subr.mxu0 0.0
  %728 = vmatpush1.msra.mxu0 0.0
  %729 = vmatprep.subr.mxu0 0.0
  %730 = vmatpush1.msra.mxu0 0.0
  %731 = vmatprep.subr.mxu0 0.0
  %732 = vmatpush1.msra.mxu0 0.0
  %733 = vmatprep.subr.mxu0 0.0
  %734 = vmatpush1.msra.mxu0 0.0
  %735 = vmatprep.subr.mxu0 0.0
  %736 = vmatpush1.msra.mxu0 0.0
  %737 = vmatprep.subr.mxu0 0.0
  %738 = vmatpush1.msra.mxu0 0.0
  %739 = vmatprep.subr.mxu0 0.0
  %740 = vmatpush1.msra.mxu0 0.0
  %741 = vmatprep.subr.mxu0 0.0
  %742 = vmatpush1.msra.mxu0 0.0
  %743 = vmatprep.subr.mxu0 0.0
  %744 = vmatpush1.msra.mxu0 0.0
  %745 = vmatprep.subr.mxu0 0.0
  %746 = vmatpush1.msra.mxu0 0.0
  %747 = vmatprep.subr.mxu0 0.0
  %748 = vmatpush1.msra.mxu0 0.0
  %749 = vmatprep.subr.mxu0 0.0
  %750 = vmatpush1.msra.mxu0 0.0
  %751 = vmatprep.subr.mxu0 0.0
  %752 = vmatpush1.msra.mxu0 %v48
  %753 = vmatprep.subr.mxu0 0.0
  %754 = vmatpush1.msra.mxu0 %v47
  %755 = vmatprep.subr.mxu0 0.0
  %756 = vmatpush1.msra.mxu0 %v46
  %757 = vmatprep.subr.mxu0 0.0
  %758 = vmatpush1.msra.mxu0 %v45
  %759 = vmatprep.subr.mxu0 0.0
  %760 = vmatpush2.msra.mxu0 0.0
  %761 = vmatprep.subr.mxu0 0.0
  %762 = vmatpush2.msra.mxu0 0.0
  %763 = vmatprep.subr.mxu0 0.0
  %764 = vmatpush2.msra.mxu0 0.0
  %765 = vmatprep.subr.mxu0 0.0
  %766 = vmatpush2.msra.mxu0 0.0
  %767 = vmatprep.subr.mxu0 0.0
  %768 = vmatpush2.msra.mxu0 0.0
  %769 = vmatprep.subr.mxu0 0.0
  %770 = vmatpush2.msra.mxu0 0.0
  %771 = vmatprep.subr.mxu0 0.0
  %772 = vmatpush2.msra.mxu0 0.0
  %773 = vmatprep.subr.mxu0 0.0
  %774 = vmatpush2.msra.mxu0 0.0
  %775 = vmatprep.subr.mxu0 0.0
  %776 = vmatpush2.msra.mxu0 0.0
  %777 = vmatprep.subr.mxu0 0.0
  %778 = vmatpush2.msra.mxu0 0.0
  %779 = vmatprep.subr.mxu0 0.0
  %780 = vmatpush2.msra.mxu0 0.0
  %781 = vmatprep.subr.mxu0 0.0
  %782 = vmatpush2.msra.mxu0 0.0
  %783 = vmatprep.subr.mxu0 0.0
  %784 = vmatpush2.msra.mxu0 0.0
  %785 = vmatprep.subr.mxu0 0.0
  %786 = vmatpush2.msra.mxu0 0.0
  %787 = vmatprep.subr.mxu0 0.0
  %788 = vmatpush2.msra.mxu0 0.0
  %789 = vmatprep.subr.mxu0 0.0
  %790 = vmatpush2.msra.mxu0 0.0
  %791 = vmatprep.mubr.f32.mxu0 0.0
  %792 = vmatmul.mubr.f32.gmra.mxu0 %v725
  %v793 = vpop.f32.mrf.mxu0
  %v794 = vadd.f32 0.0, %v793
  %v795 = vpop.f32.mrf.mxu0
  %796 = vdwg.mxu0
  %v797 = vadd.f32 %v724, %v794
  %v798 = vsub.f32 0.0, %v797
  %v799 = vmul.f32 %v798, 1.442695
  %v800 = vpow.pop %v799
  %v801 = vadd.f32 %v800, 1.0
  %v802 = vrcp.pop %v801
  %v803 = vmul.f32 1.0, %v802
  %v804 = vtanh.pop %v797
  %v805 = vmul.f32 %v803, %v712
  %807 = vrot.lane.b32.xlu0 %v804, 64
  %v808 = vpop.permute.xlu0 %807
  %v810 = vmul.f32 %v803, %v808
  %812 = vrot.lane.b32.xlu0 %v810, 32
  %v813 = vpop.permute.xlu0 %812
  %v815 = vadd.f32 %v805, %v813
  %v816 = vtanh.pop %v815
  %818 = vrot.lane.b32.xlu0 %v816, 64
  %v819 = vpop.permute.xlu0 %818
  %v821 = vmul.f32 %v803, %v819
  %823 = vrot.lane.b32.xlu0 %v821, 32
  %v824 = vpop.permute.xlu0 %823
  %826 = vst.msk [vmem:[#allocation2 + $0x28] sm:$0xff] %vm64, %v824
  %v827 = vld [vmem:[#allocation3 + $0x30] sm:$0xff]
  %v828 = vsel %vm64, %v824, 0
  %830 = vmatprep.subr.mxu0 0.0
  %831 = vmatpush1.msra.mxu0 0.0
  %832 = vmatprep.subr.mxu0 0.0
  %833 = vmatpush1.msra.mxu0 0.0
  %834 = vmatprep.subr.mxu0 0.0
  %835 = vmatpush1.msra.mxu0 0.0
  %836 = vmatprep.subr.mxu0 0.0
  %837 = vmatpush1.msra.mxu0 0.0
  %838 = vmatprep.subr.mxu0 0.0
  %839 = vmatpush1.msra.mxu0 0.0
  %840 = vmatprep.subr.mxu0 0.0
  %841 = vmatpush1.msra.mxu0 0.0
  %842 = vmatprep.subr.mxu0 0.0
  %843 = vmatpush1.msra.mxu0 0.0
  %844 = vmatprep.subr.mxu0 0.0
  %845 = vmatpush1.msra.mxu0 0.0
  %846 = vmatprep.subr.mxu0 0.0
  %847 = vmatpush1.msra.mxu0 0.0
  %848 = vmatprep.subr.mxu0 0.0
  %849 = vmatpush1.msra.mxu0 0.0
  %850 = vmatprep.subr.mxu0 0.0
  %851 = vmatpush1.msra.mxu0 0.0
  %852 = vmatprep.subr.mxu0 0.0
  %853 = vmatpush1.msra.mxu0 0.0
  %854 = vmatprep.subr.mxu0 0.0
  %855 = vmatpush1.msra.mxu0 %v48
  %856 = vmatprep.subr.mxu0 0.0
  %857 = vmatpush1.msra.mxu0 %v47
  %858 = vmatprep.subr.mxu0 0.0
  %859 = vmatpush1.msra.mxu0 %v46
  %860 = vmatprep.subr.mxu0 0.0
  %861 = vmatpush1.msra.mxu0 %v45
  %862 = vmatprep.subr.mxu0 0.0
  %863 = vmatpush2.msra.mxu0 0.0
  %864 = vmatprep.subr.mxu0 0.0
  %865 = vmatpush2.msra.mxu0 0.0
  %866 = vmatprep.subr.mxu0 0.0
  %867 = vmatpush2.msra.mxu0 0.0
  %868 = vmatprep.subr.mxu0 0.0
  %869 = vmatpush2.msra.mxu0 0.0
  %870 = vmatprep.subr.mxu0 0.0
  %871 = vmatpush2.msra.mxu0 0.0
  %872 = vmatprep.subr.mxu0 0.0
  %873 = vmatpush2.msra.mxu0 0.0
  %874 = vmatprep.subr.mxu0 0.0
  %875 = vmatpush2.msra.mxu0 0.0
  %876 = vmatprep.subr.mxu0 0.0
  %877 = vmatpush2.msra.mxu0 0.0
  %878 = vmatprep.subr.mxu0 0.0
  %879 = vmatpush2.msra.mxu0 0.0
  %880 = vmatprep.subr.mxu0 0.0
  %881 = vmatpush2.msra.mxu0 0.0
  %882 = vmatprep.subr.mxu0 0.0
  %883 = vmatpush2.msra.mxu0 0.0
  %884 = vmatprep.subr.mxu0 0.0
  %885 = vmatpush2.msra.mxu0 0.0
  %886 = vmatprep.subr.mxu0 0.0
  %887 = vmatpush2.msra.mxu0 0.0
  %888 = vmatprep.subr.mxu0 0.0
  %889 = vmatpush2.msra.mxu0 0.0
  %890 = vmatprep.subr.mxu0 0.0
  %891 = vmatpush2.msra.mxu0 0.0
  %892 = vmatprep.subr.mxu0 0.0
  %893 = vmatpush2.msra.mxu0 0.0
  %894 = vmatprep.mubr.f32.mxu0 0.0
  %895 = vmatmul.mubr.f32.gmra.mxu0 %v828
  %v896 = vpop.f32.mrf.mxu0
  %v897 = vadd.f32 0.0, %v896
  %v898 = vpop.f32.mrf.mxu0
  %899 = vdwg.mxu0
  %v900 = vadd.f32 %v827, %v897
  %v901 = vsub.f32 0.0, %v900
  %v902 = vmul.f32 %v901, 1.442695
  %v903 = vpow.pop %v902
  %v904 = vadd.f32 %v903, 1.0
  %v905 = vrcp.pop %v904
  %v906 = vmul.f32 1.0, %v905
  %v907 = vtanh.pop %v900
  %v908 = vmul.f32 %v906, %v815
  %910 = vrot.lane.b32.xlu0 %v907, 64
  %v911 = vpop.permute.xlu0 %910
  %v913 = vmul.f32 %v906, %v911
  %915 = vrot.lane.b32.xlu0 %v913, 32
  %v916 = vpop.permute.xlu0 %915
  %v918 = vadd.f32 %v908, %v916
  %v919 = vtanh.pop %v918
  %921 = vrot.lane.b32.xlu0 %v919, 64
  %v922 = vpop.permute.xlu0 %921
  %v924 = vmul.f32 %v906, %v922
  %926 = vrot.lane.b32.xlu0 %v924, 32
  %v927 = vpop.permute.xlu0 %926
  %929 = vst.msk [vmem:[#allocation2 + $0x30] sm:$0xff] %vm64, %v927
  %v930 = vld [vmem:[#allocation3 + $0x38] sm:$0xff]
  %v931 = vsel %vm64, %v927, 0
  %933 = vmatprep.subr.mxu0 0.0
  %934 = vmatpush1.msra.mxu0 0.0
  %935 = vmatprep.subr.mxu0 0.0
  %936 = vmatpush1.msra.mxu0 0.0
  %937 = vmatprep.subr.mxu0 0.0
  %938 = vmatpush1.msra.mxu0 0.0
  %939 = vmatprep.subr.mxu0 0.0
  %940 = vmatpush1.msra.mxu0 0.0
  %941 = vmatprep.subr.mxu0 0.0
  %942 = vmatpush1.msra.mxu0 0.0
  %943 = vmatprep.subr.mxu0 0.0
  %944 = vmatpush1.msra.mxu0 0.0
  %945 = vmatprep.subr.mxu0 0.0
  %946 = vmatpush1.msra.mxu0 0.0
  %947 = vmatprep.subr.mxu0 0.0
  %948 = vmatpush1.msra.mxu0 0.0
  %949 = vmatprep.subr.mxu0 0.0
  %950 = vmatpush1.msra.mxu0 0.0
  %951 = vmatprep.subr.mxu0 0.0
  %952 = vmatpush1.msra.mxu0 0.0
  %953 = vmatprep.subr.mxu0 0.0
  %954 = vmatpush1.msra.mxu0 0.0
  %955 = vmatprep.subr.mxu0 0.0
  %956 = vmatpush1.msra.mxu0 0.0
  %957 = vmatprep.subr.mxu0 0.0
  %958 = vmatpush1.msra.mxu0 %v48
  %959 = vmatprep.subr.mxu0 0.0
  %960 = vmatpush1.msra.mxu0 %v47
  %961 = vmatprep.subr.mxu0 0.0
  %962 = vmatpush1.msra.mxu0 %v46
  %963 = vmatprep.subr.mxu0 0.0
  %964 = vmatpush1.msra.mxu0 %v45
  %965 = vmatprep.subr.mxu0 0.0
  %966 = vmatpush2.msra.mxu0 0.0
  %967 = vmatprep.subr.mxu0 0.0
  %968 = vmatpush2.msra.mxu0 0.0
  %969 = vmatprep.subr.mxu0 0.0
  %970 = vmatpush2.msra.mxu0 0.0
  %971 = vmatprep.subr.mxu0 0.0
  %972 = vmatpush2.msra.mxu0 0.0
  %973 = vmatprep.subr.mxu0 0.0
  %974 = vmatpush2.msra.mxu0 0.0
  %975 = vmatprep.subr.mxu0 0.0
  %976 = vmatpush2.msra.mxu0 0.0
  %977 = vmatprep.subr.mxu0 0.0
  %978 = vmatpush2.msra.mxu0 0.0
  %979 = vmatprep.subr.mxu0 0.0
  %980 = vmatpush2.msra.mxu0 0.0
  %981 = vmatprep.subr.mxu0 0.0
  %982 = vmatpush2.msra.mxu0 0.0
  %983 = vmatprep.subr.mxu0 0.0
  %984 = vmatpush2.msra.mxu0 0.0
  %985 = vmatprep.subr.mxu0 0.0
  %986 = vmatpush2.msra.mxu0 0.0
  %987 = vmatprep.subr.mxu0 0.0
  %988 = vmatpush2.msra.mxu0 0.0
  %989 = vmatprep.subr.mxu0 0.0
  %990 = vmatpush2.msra.mxu0 0.0
  %991 = vmatprep.subr.mxu0 0.0
  %992 = vmatpush2.msra.mxu0 0.0
  %993 = vmatprep.subr.mxu0 0.0
  %994 = vmatpush2.msra.mxu0 0.0
  %995 = vmatprep.subr.mxu0 0.0
  %996 = vmatpush2.msra.mxu0 0.0
  %997 = vmatprep.mubr.f32.mxu0 0.0
  %998 = vmatmul.mubr.f32.gmra.mxu0 %v931
  %v999 = vpop.f32.mrf.mxu0
  %v1000 = vadd.f32 0.0, %v999
  %v1001 = vpop.f32.mrf.mxu0
  %1002 = vdwg.mxu0
  %v1003 = vadd.f32 %v930, %v1000
  %v1004 = vsub.f32 0.0, %v1003
  %v1005 = vmul.f32 %v1004, 1.442695
  %v1006 = vpow.pop %v1005
  %v1007 = vadd.f32 %v1006, 1.0
  %v1008 = vrcp.pop %v1007
  %v1009 = vmul.f32 1.0, %v1008
  %v1010 = vtanh.pop %v1003
  %v1011 = vmul.f32 %v1009, %v918
  %1013 = vrot.lane.b32.xlu0 %v1010, 64
  %v1014 = vpop.permute.xlu0 %1013
  %v1016 = vmul.f32 %v1009, %v1014
  %1018 = vrot.lane.b32.xlu0 %v1016, 32
  %v1019 = vpop.permute.xlu0 %1018
  %v1021 = vadd.f32 %v1011, %v1019
  %v1022 = vtanh.pop %v1021
  %1024 = vrot.lane.b32.xlu0 %v1022, 64
  %v1025 = vpop.permute.xlu0 %1024
  %v1027 = vmul.f32 %v1009, %v1025
  %1029 = vrot.lane.b32.xlu0 %v1027, 32
  %v1030 = vpop.permute.xlu0 %1029
  %1032 = vst.msk [vmem:[#allocation2 + $0x38] sm:$0xff] %vm64, %v1030
  %v1033 = vld [vmem:[#allocation2] sm:$0xff]
  %v1034 = vld [vmem:[#allocation2 + $0x8] sm:$0xff]
  %v1035 = vld [vmem:[#allocation2 + $0x10] sm:$0xff]
  %v1036 = vld [vmem:[#allocation2 + $0x18] sm:$0xff]
  %v1037 = vld [vmem:[#allocation2 + $0x20] sm:$0xff]
  %v1038 = vld [vmem:[#allocation2 + $0x28] sm:$0xff]
  %v1039 = vld [vmem:[#allocation2 + $0x30] sm:$0xff]
  %v1040 = vld [vmem:[#allocation2 + $0x38] sm:$0xff]
  %v1041 = vld [vmem:[%s6] sm:$0xff]
  %v1042 = vld [vmem:[%s6 + $0x8] sm:$0xff]
  %v1043 = vld [vmem:[%s6 + $0x10] sm:$0xff]
  %v1044 = vld [vmem:[%s6 + $0x18] sm:$0xff]
  %v1045 = vld [vmem:[%s7] sm:$0x1]
  %v1047 = vlaneseq
  %v1048 = vshrl.u32 %v1047, 7
  %v1049 = vsub.s32 0, %v1048
  %v1050 = vrot.slane %v1045, %v1049
  %v1053 = vsel %vm64, %v1033, 0
  %v1056 = vsel %vm64, %v1034, 0
  %v1059 = vsel %vm64, %v1035, 0
  %v1062 = vsel %vm64, %v1036, 0
  %v1065 = vsel %vm64, %v1037, 0
  %v1068 = vsel %vm64, %v1038, 0
  %v1071 = vsel %vm64, %v1039, 0
  %v1074 = vsel %vm64, %v1040, 0
  %1076 = vmatprep.subr.mxu0 0.0
  %1077 = vmatpush1.msra.mxu0 0.0
  %1078 = vmatprep.subr.mxu0 0.0
  %1079 = vmatpush1.msra.mxu0 0.0
  %1080 = vmatprep.subr.mxu0 0.0
  %1081 = vmatpush1.msra.mxu0 0.0
  %1082 = vmatprep.subr.mxu0 0.0
  %1083 = vmatpush1.msra.mxu0 0.0
  %1084 = vmatprep.subr.mxu0 0.0
  %1085 = vmatpush1.msra.mxu0 0.0
  %1086 = vmatprep.subr.mxu0 0.0
  %1087 = vmatpush1.msra.mxu0 0.0
  %1088 = vmatprep.subr.mxu0 0.0
  %1089 = vmatpush1.msra.mxu0 0.0
  %1090 = vmatprep.subr.mxu0 0.0
  %1091 = vmatpush1.msra.mxu0 0.0
  %1092 = vmatprep.subr.mxu0 0.0
  %1093 = vmatpush1.msra.mxu0 0.0
  %1094 = vmatprep.subr.mxu0 0.0
  %1095 = vmatpush1.msra.mxu0 0.0
  %1096 = vmatprep.subr.mxu0 0.0
  %1097 = vmatpush1.msra.mxu0 0.0
  %1098 = vmatprep.subr.mxu0 0.0
  %1099 = vmatpush1.msra.mxu0 0.0
  %1100 = vmatprep.subr.mxu0 0.0
  %1101 = vmatpush1.msra.mxu0 %v1044
  %1102 = vmatprep.subr.mxu0 0.0
  %1103 = vmatpush1.msra.mxu0 %v1043
  %1104 = vmatprep.subr.mxu0 0.0
  %1105 = vmatpush1.msra.mxu0 %v1042
  %1106 = vmatprep.subr.mxu0 0.0
  %1107 = vmatpush1.msra.mxu0 %v1041
  %1108 = vmatprep.subr.mxu0 0.0
  %1109 = vmatpush2.msra.mxu0 0.0
  %1110 = vmatprep.subr.mxu0 0.0
  %1111 = vmatpush2.msra.mxu0 0.0
  %1112 = vmatprep.subr.mxu0 0.0
  %1113 = vmatpush2.msra.mxu0 0.0
  %1114 = vmatprep.subr.mxu0 0.0
  %1115 = vmatpush2.msra.mxu0 0.0
  %1116 = vmatprep.subr.mxu0 0.0
  %1117 = vmatpush2.msra.mxu0 0.0
  %1118 = vmatprep.subr.mxu0 0.0
  %1119 = vmatpush2.msra.mxu0 0.0
  %1120 = vmatprep.subr.mxu0 0.0
  %1121 = vmatpush2.msra.mxu0 0.0
  %1122 = vmatprep.subr.mxu0 0.0
  %1123 = vmatpush2.msra.mxu0 0.0
  %1124 = vmatprep.subr.mxu0 0.0
  %1125 = vmatpush2.msra.mxu0 0.0
  %1126 = vmatprep.subr.mxu0 0.0
  %1127 = vmatpush2.msra.mxu0 0.0
  %1128 = vmatprep.subr.mxu0 0.0
  %1129 = vmatpush2.msra.mxu0 0.0
  %1130 = vmatprep.subr.mxu0 0.0
  %1131 = vmatpush2.msra.mxu0 0.0
  %1132 = vmatprep.subr.mxu0 0.0
  %1133 = vmatpush2.msra.mxu0 0.0
  %1134 = vmatprep.subr.mxu0 0.0
  %1135 = vmatpush2.msra.mxu0 0.0
  %1136 = vmatprep.subr.mxu0 0.0
  %1137 = vmatpush2.msra.mxu0 0.0
  %1138 = vmatprep.subr.mxu0 0.0
  %1139 = vmatpush2.msra.mxu0 0.0
  %1140 = vmatprep.mubr.f32.mxu0 0.0
  %1141 = vmatmul.mubr.f32.gmra.mxu0 %v1053
  %v1142 = vpop.f32.mrf.mxu0
  %v1143 = vadd.f32 %v1050, %v1142
  %v1144 = vpop.f32.mrf.mxu0
  %1145 = vmatprep.mubr.f32.mxu0 0.0
  %1146 = vmatmul.mubr.f32.gmra.mxu0 %v1056
  %v1147 = vpop.f32.mrf.mxu0
  %v1148 = vadd.f32 %v1050, %v1147
  %v1149 = vpop.f32.mrf.mxu0
  %1150 = vmatprep.mubr.f32.mxu0 0.0
  %1151 = vmatmul.mubr.f32.gmra.mxu0 %v1059
  %v1152 = vpop.f32.mrf.mxu0
  %v1153 = vadd.f32 %v1050, %v1152
  %v1154 = vpop.f32.mrf.mxu0
  %1155 = vmatprep.mubr.f32.mxu0 0.0
  %1156 = vmatmul.mubr.f32.gmra.mxu0 %v1062
  %v1157 = vpop.f32.mrf.mxu0
  %v1158 = vadd.f32 %v1050, %v1157
  %v1159 = vpop.f32.mrf.mxu0
  %1160 = vmatprep.mubr.f32.mxu0 0.0
  %1161 = vmatmul.mubr.f32.gmra.mxu0 %v1065
  %v1162 = vpop.f32.mrf.mxu0
  %v1163 = vadd.f32 %v1050, %v1162
  %v1164 = vpop.f32.mrf.mxu0
  %1165 = vmatprep.mubr.f32.mxu0 0.0
  %1166 = vmatmul.mubr.f32.gmra.mxu0 %v1068
  %v1167 = vpop.f32.mrf.mxu0
  %v1168 = vadd.f32 %v1050, %v1167
  %v1169 = vpop.f32.mrf.mxu0
  %1170 = vmatprep.mubr.f32.mxu0 0.0
  %1171 = vmatmul.mubr.f32.gmra.mxu0 %v1071
  %v1172 = vpop.f32.mrf.mxu0
  %v1173 = vadd.f32 %v1050, %v1172
  %v1174 = vpop.f32.mrf.mxu0
  %1175 = vmatprep.mubr.f32.mxu0 0.0
  %1176 = vmatmul.mubr.f32.gmra.mxu0 %v1074
  %v1177 = vpop.f32.mrf.mxu0
  %v1178 = vadd.f32 %v1050, %v1177
  %v1179 = vpop.f32.mrf.mxu0
  %1180 = vdwg.mxu0
  %v1181 = vtanh.pop %v1143
  %v1182 = vtanh.pop %v1148
  %v1183 = vtanh.pop %v1153
  %v1184 = vtanh.pop %v1158
  %v1185 = vtanh.pop %v1163
  %v1186 = vtanh.pop %v1168
  %v1187 = vtanh.pop %v1173
  %v1188 = vtanh.pop %v1178
  %1189 = vst.msk [vmem:[#allocation2] sm:$0xff] %vm64, %v1181
  %1190 = vst.msk [vmem:[#allocation2 + $0x8] sm:$0xff] %vm64, %v1182
  %1191 = vst.msk [vmem:[#allocation2 + $0x10] sm:$0xff] %vm64, %v1183
  %1192 = vst.msk [vmem:[#allocation2 + $0x18] sm:$0xff] %vm64, %v1184
  %1193 = vst.msk [vmem:[#allocation2 + $0x20] sm:$0xff] %vm64, %v1185
  %1194 = vst.msk [vmem:[#allocation2 + $0x28] sm:$0xff] %vm64, %v1186
  %1195 = vst.msk [vmem:[#allocation2 + $0x30] sm:$0xff] %vm64, %v1187
  %1196 = vst.msk [vmem:[#allocation2 + $0x38] sm:$0xff] %vm64, %v1188
  %v1197 = vld [vmem:[#allocation2] sm:$0xff]
  %v1198 = vld [vmem:[#allocation2 + $0x8] sm:$0xff]
  %v1199 = vld [vmem:[#allocation2 + $0x10] sm:$0xff]
  %v1200 = vld [vmem:[#allocation2 + $0x18] sm:$0xff]
  %v1201 = vld [vmem:[#allocation2 + $0x20] sm:$0xff]
  %v1202 = vld [vmem:[#allocation2 + $0x28] sm:$0xff]
  %v1203 = vld [vmem:[#allocation2 + $0x30] sm:$0xff]
  %v1204 = vld [vmem:[#allocation2 + $0x38] sm:$0xff]
  %v1205 = vld [vmem:[%s8] sm:$0xff]
  %v1206 = vld [vmem:[%s8 + $0x8] sm:$0xff]
  %v1207 = vld [vmem:[%s8 + $0x10] sm:$0xff]
  %v1208 = vld [vmem:[%s8 + $0x18] sm:$0xff]
  %v1210 = vsel %vm64, %v1197, 0
  %v1213 = vsel %vm64, %v1198, 0
  %v1216 = vsel %vm64, %v1199, 0
  %v1219 = vsel %vm64, %v1200, 0
  %v1222 = vsel %vm64, %v1201, 0
  %v1225 = vsel %vm64, %v1202, 0
  %v1228 = vsel %vm64, %v1203, 0
  %v1231 = vsel %vm64, %v1204, 0
  %1233 = vmatprep.subr.mxu0 0.0
  %1234 = vmatpush1.msra.mxu0 0.0
  %1235 = vmatprep.subr.mxu0 0.0
  %1236 = vmatpush1.msra.mxu0 0.0
  %1237 = vmatprep.subr.mxu0 0.0
  %1238 = vmatpush1.msra.mxu0 0.0
  %1239 = vmatprep.subr.mxu0 0.0
  %1240 = vmatpush1.msra.mxu0 0.0
  %1241 = vmatprep.subr.mxu0 0.0
  %1242 = vmatpush1.msra.mxu0 0.0
  %1243 = vmatprep.subr.mxu0 0.0
  %1244 = vmatpush1.msra.mxu0 0.0
  %1245 = vmatprep.subr.mxu0 0.0
  %1246 = vmatpush1.msra.mxu0 0.0
  %1247 = vmatprep.subr.mxu0 0.0
  %1248 = vmatpush1.msra.mxu0 0.0
  %1249 = vmatprep.subr.mxu0 0.0
  %1250 = vmatpush1.msra.mxu0 0.0
  %1251 = vmatprep.subr.mxu0 0.0
  %1252 = vmatpush1.msra.mxu0 0.0
  %1253 = vmatprep.subr.mxu0 0.0
  %1254 = vmatpush1.msra.mxu0 0.0
  %1255 = vmatprep.subr.mxu0 0.0
  %1256 = vmatpush1.msra.mxu0 0.0
  %1257 = vmatprep.subr.mxu0 0.0
  %1258 = vmatpush1.msra.mxu0 %v1208
  %1259 = vmatprep.subr.mxu0 0.0
  %1260 = vmatpush1.msra.mxu0 %v1207
  %1261 = vmatprep.subr.mxu0 0.0
  %1262 = vmatpush1.msra.mxu0 %v1206
  %1263 = vmatprep.subr.mxu0 0.0
  %1264 = vmatpush1.msra.mxu0 %v1205
  %1265 = vmatprep.subr.mxu0 0.0
  %1266 = vmatpush2.msra.mxu0 0.0
  %1267 = vmatprep.subr.mxu0 0.0
  %1268 = vmatpush2.msra.mxu0 0.0
  %1269 = vmatprep.subr.mxu0 0.0
  %1270 = vmatpush2.msra.mxu0 0.0
  %1271 = vmatprep.subr.mxu0 0.0
  %1272 = vmatpush2.msra.mxu0 0.0
  %1273 = vmatprep.subr.mxu0 0.0
  %1274 = vmatpush2.msra.mxu0 0.0
  %1275 = vmatprep.subr.mxu0 0.0
  %1276 = vmatpush2.msra.mxu0 0.0
  %1277 = vmatprep.subr.mxu0 0.0
  %1278 = vmatpush2.msra.mxu0 0.0
  %1279 = vmatprep.subr.mxu0 0.0
  %1280 = vmatpush2.msra.mxu0 0.0
  %1281 = vmatprep.subr.mxu0 0.0
  %1282 = vmatpush2.msra.mxu0 0.0
  %1283 = vmatprep.subr.mxu0 0.0
  %1284 = vmatpush2.msra.mxu0 0.0
  %1285 = vmatprep.subr.mxu0 0.0
  %1286 = vmatpush2.msra.mxu0 0.0
  %1287 = vmatprep.subr.mxu0 0.0
  %1288 = vmatpush2.msra.mxu0 0.0
  %1289 = vmatprep.subr.mxu0 0.0
  %1290 = vmatpush2.msra.mxu0 0.0
  %1291 = vmatprep.subr.mxu0 0.0
  %1292 = vmatpush2.msra.mxu0 0.0
  %1293 = vmatprep.subr.mxu0 0.0
  %1294 = vmatpush2.msra.mxu0 0.0
  %1295 = vmatprep.subr.mxu0 0.0
  %1296 = vmatpush2.msra.mxu0 0.0
  %1297 = vmatprep.mubr.f32.mxu0 0.0
  %1298 = vmatmul.mubr.f32.gmra.mxu0 %v1210
  %v1299 = vpop.f32.mrf.mxu0
  %v1300 = vadd.f32 0.0, %v1299
  %v1301 = vpop.f32.mrf.mxu0
  %1302 = vmatprep.mubr.f32.mxu0 0.0
  %1303 = vmatmul.mubr.f32.gmra.mxu0 %v1213
  %v1304 = vpop.f32.mrf.mxu0
  %v1305 = vadd.f32 0.0, %v1304
  %v1306 = vpop.f32.mrf.mxu0
  %1307 = vmatprep.mubr.f32.mxu0 0.0
  %1308 = vmatmul.mubr.f32.gmra.mxu0 %v1216
  %v1309 = vpop.f32.mrf.mxu0
  %v1310 = vadd.f32 0.0, %v1309
  %v1311 = vpop.f32.mrf.mxu0
  %1312 = vmatprep.mubr.f32.mxu0 0.0
  %1313 = vmatmul.mubr.f32.gmra.mxu0 %v1219
  %v1314 = vpop.f32.mrf.mxu0
  %v1315 = vadd.f32 0.0, %v1314
  %v1316 = vpop.f32.mrf.mxu0
  %1317 = vmatprep.mubr.f32.mxu0 0.0
  %1318 = vmatmul.mubr.f32.gmra.mxu0 %v1222
  %v1319 = vpop.f32.mrf.mxu0
  %v1320 = vadd.f32 0.0, %v1319
  %v1321 = vpop.f32.mrf.mxu0
  %1322 = vmatprep.mubr.f32.mxu0 0.0
  %1323 = vmatmul.mubr.f32.gmra.mxu0 %v1225
  %v1324 = vpop.f32.mrf.mxu0
  %v1325 = vadd.f32 0.0, %v1324
  %v1326 = vpop.f32.mrf.mxu0
  %1327 = vmatprep.mubr.f32.mxu0 0.0
  %1328 = vmatmul.mubr.f32.gmra.mxu0 %v1228
  %v1329 = vpop.f32.mrf.mxu0
  %v1330 = vadd.f32 0.0, %v1329
  %v1331 = vpop.f32.mrf.mxu0
  %1332 = vmatprep.mubr.f32.mxu0 0.0
  %1333 = vmatmul.mubr.f32.gmra.mxu0 %v1231
  %v1334 = vpop.f32.mrf.mxu0
  %v1335 = vadd.f32 0.0, %v1334
  %v1336 = vpop.f32.mrf.mxu0
  %1337 = vdwg.mxu0
  %vm1338 = vcmask 7168
  %1339 = vst.msk [vmem:[%s11] sm:$0xff] %vm1338, %v1300
  %1340 = vst.msk [vmem:[%s11 + $0x8] sm:$0xff] %vm1338, %v1305
  %1341 = vst.msk [vmem:[%s11 + $0x10] sm:$0xff] %vm1338, %v1310
  %1342 = vst.msk [vmem:[%s11 + $0x18] sm:$0xff] %vm1338, %v1315
  %1343 = vst.msk [vmem:[%s11 + $0x20] sm:$0xff] %vm1338, %v1320
  %1344 = vst.msk [vmem:[%s11 + $0x28] sm:$0xff] %vm1338, %v1325
  %1345 = vst.msk [vmem:[%s11 + $0x30] sm:$0xff] %vm1338, %v1330
  %1346 = vst.msk [vmem:[%s11 + $0x38] sm:$0xff] %vm1338, %v1335
  %s1347 = sld [smem:[#allocation4]]
  %v1348 = vld [vmem:[%s9] sm:$0xff]
  %v1349 = vld [vmem:[%s9 + $0x8] sm:$0xff]
  %v1350 = vld [vmem:[%s9 + $0x10] sm:$0xff]
  %v1351 = vld [vmem:[%s9 + $0x18] sm:$0xff]
  %v1352 = vsel %vm64, %v1030, 0
  %1354 = vmatprep.subr.mxu0 0.0
  %1355 = vmatpush1.msra.mxu0 0.0
  %1356 = vmatprep.subr.mxu0 0.0
  %1357 = vmatpush1.msra.mxu0 0.0
  %1358 = vmatprep.subr.mxu0 0.0
  %1359 = vmatpush1.msra.mxu0 0.0
  %1360 = vmatprep.subr.mxu0 0.0
  %1361 = vmatpush1.msra.mxu0 0.0
  %1362 = vmatprep.subr.mxu0 0.0
  %1363 = vmatpush1.msra.mxu0 0.0
  %1364 = vmatprep.subr.mxu0 0.0
  %1365 = vmatpush1.msra.mxu0 0.0
  %1366 = vmatprep.subr.mxu0 0.0
  %1367 = vmatpush1.msra.mxu0 0.0
  %1368 = vmatprep.subr.mxu0 0.0
  %1369 = vmatpush1.msra.mxu0 0.0
  %1370 = vmatprep.subr.mxu0 0.0
  %1371 = vmatpush1.msra.mxu0 0.0
  %1372 = vmatprep.subr.mxu0 0.0
  %1373 = vmatpush1.msra.mxu0 0.0
  %1374 = vmatprep.subr.mxu0 0.0
  %1375 = vmatpush1.msra.mxu0 0.0
  %1376 = vmatprep.subr.mxu0 0.0
  %1377 = vmatpush1.msra.mxu0 0.0
  %1378 = vmatprep.subr.mxu0 0.0
  %1379 = vmatpush1.msra.mxu0 %v1351
  %1380 = vmatprep.subr.mxu0 0.0
  %1381 = vmatpush1.msra.mxu0 %v1350
  %1382 = vmatprep.subr.mxu0 0.0
  %1383 = vmatpush1.msra.mxu0 %v1349
  %1384 = vmatprep.subr.mxu0 0.0
  %1385 = vmatpush1.msra.mxu0 %v1348
  %1386 = vmatprep.subr.mxu0 0.0
  %1387 = vmatpush2.msra.mxu0 0.0
  %1388 = vmatprep.subr.mxu0 0.0
  %1389 = vmatpush2.msra.mxu0 0.0
  %1390 = vmatprep.subr.mxu0 0.0
  %1391 = vmatpush2.msra.mxu0 0.0
  %1392 = vmatprep.subr.mxu0 0.0
  %1393 = vmatpush2.msra.mxu0 0.0
  %1394 = vmatprep.subr.mxu0 0.0
  %1395 = vmatpush2.msra.mxu0 0.0
  %1396 = vmatprep.subr.mxu0 0.0
  %1397 = vmatpush2.msra.mxu0 0.0
  %1398 = vmatprep.subr.mxu0 0.0
  %1399 = vmatpush2.msra.mxu0 0.0
  %1400 = vmatprep.subr.mxu0 0.0
  %1401 = vmatpush2.msra.mxu0 0.0
  %1402 = vmatprep.subr.mxu0 0.0
  %1403 = vmatpush2.msra.mxu0 0.0
  %1404 = vmatprep.subr.mxu0 0.0
  %1405 = vmatpush2.msra.mxu0 0.0
  %1406 = vmatprep.subr.mxu0 0.0
  %1407 = vmatpush2.msra.mxu0 0.0
  %1408 = vmatprep.subr.mxu0 0.0
  %1409 = vmatpush2.msra.mxu0 0.0
  %1410 = vmatprep.subr.mxu0 0.0
  %1411 = vmatpush2.msra.mxu0 0.0
  %1412 = vmatprep.subr.mxu0 0.0
  %1413 = vmatpush2.msra.mxu0 0.0
  %1414 = vmatprep.subr.mxu0 0.0
  %1415 = vmatpush2.msra.mxu0 0.0
  %1416 = vmatprep.subr.mxu0 0.0
  %1417 = vmatpush2.msra.mxu0 0.0
  %1418 = vmatprep.mubr.f32.mxu0 0.0
  %1419 = vmatmul.mubr.f32.gmra.mxu0 %v1352
  %v1420 = vpop.f32.mrf.mxu0
  %v1421 = vadd.f32 0.0, %v1420
  %v1422 = vpop.f32.mrf.mxu0
  %1423 = vdwg.mxu0
  %v1424 = vstv %s1347
  %v1425 = vadd.f32 %v1424, %v1421
  %v1426 = vld [vmem:[%s11] sm:$0xff]
  %v1427 = vadd.f32 %v1426, %v1425
  %v1428 = vld [vmem:[%s11 + $0x8] sm:$0xff]
  %v1429 = vadd.f32 %v1428, %v1425
  %v1430 = vmax.f32 %v1427, %v1429
  %v1431 = vld [vmem:[%s11 + $0x10] sm:$0xff]
  %v1432 = vadd.f32 %v1431, %v1425
  %v1433 = vmax.f32 %v1430, %v1432
  %v1434 = vld [vmem:[%s11 + $0x18] sm:$0xff]
  %v1435 = vadd.f32 %v1434, %v1425
  %v1436 = vmax.f32 %v1433, %v1435
  %v1437 = vld [vmem:[%s11 + $0x20] sm:$0xff]
  %v1438 = vadd.f32 %v1437, %v1425
  %v1439 = vmax.f32 %v1436, %v1438
  %v1440 = vld [vmem:[%s11 + $0x28] sm:$0xff]
  %v1441 = vadd.f32 %v1440, %v1425
  %v1442 = vmax.f32 %v1439, %v1441
  %v1443 = vld [vmem:[%s11 + $0x30] sm:$0xff]
  %v1444 = vadd.f32 %v1443, %v1425
  %v1445 = vmax.f32 %v1442, %v1444
  %v1446 = vld [vmem:[%s11 + $0x38] sm:$0xff]
  %v1447 = vadd.f32 %v1446, %v1425
  %v1448 = vmax.f32 %v1445, %v1447
  %v1449 = vsub.f32 %v1427, %v1448
  %v1450 = vmul.f32 %v1449, 1.442695
  %v1451 = vpow.pop %v1450
  %1452 = vst.msk [vmem:[%s11] sm:$0xff] %vm1338, %v1451
  %v1453 = vadd.f32 %v1451, 0.0
  %v1454 = vld [vmem:[%s11 + $0x8] sm:$0xff]
  %v1455 = vadd.f32 %v1454, %v1425
  %v1456 = vsub.f32 %v1455, %v1448
  %v1457 = vmul.f32 %v1456, 1.442695
  %v1458 = vpow.pop %v1457
  %1459 = vst.msk [vmem:[%s11 + $0x8] sm:$0xff] %vm1338, %v1458
  %v1460 = vadd.f32 %v1453, %v1458
  %v1461 = vld [vmem:[%s11 + $0x10] sm:$0xff]
  %v1462 = vadd.f32 %v1461, %v1425
  %v1463 = vsub.f32 %v1462, %v1448
  %v1464 = vmul.f32 %v1463, 1.442695
  %v1465 = vpow.pop %v1464
  %1466 = vst.msk [vmem:[%s11 + $0x10] sm:$0xff] %vm1338, %v1465
  %v1467 = vadd.f32 %v1460, %v1465
  %v1468 = vld [vmem:[%s11 + $0x18] sm:$0xff]
  %v1469 = vadd.f32 %v1468, %v1425
  %v1470 = vsub.f32 %v1469, %v1448
  %v1471 = vmul.f32 %v1470, 1.442695
  %v1472 = vpow.pop %v1471
  %1473 = vst.msk [vmem:[%s11 + $0x18] sm:$0xff] %vm1338, %v1472
  %v1474 = vadd.f32 %v1467, %v1472
  %v1475 = vld [vmem:[%s11 + $0x20] sm:$0xff]
  %v1476 = vadd.f32 %v1475, %v1425
  %v1477 = vsub.f32 %v1476, %v1448
  %v1478 = vmul.f32 %v1477, 1.442695
  %v1479 = vpow.pop %v1478
  %1480 = vst.msk [vmem:[%s11 + $0x20] sm:$0xff] %vm1338, %v1479
  %v1481 = vadd.f32 %v1474, %v1479
  %v1482 = vld [vmem:[%s11 + $0x28] sm:$0xff]
  %v1483 = vadd.f32 %v1482, %v1425
  %v1484 = vsub.f32 %v1483, %v1448
  %v1485 = vmul.f32 %v1484, 1.442695
  %v1486 = vpow.pop %v1485
  %1487 = vst.msk [vmem:[%s11 + $0x28] sm:$0xff] %vm1338, %v1486
  %v1488 = vadd.f32 %v1481, %v1486
  %v1489 = vld [vmem:[%s11 + $0x30] sm:$0xff]
  %v1490 = vadd.f32 %v1489, %v1425
  %v1491 = vsub.f32 %v1490, %v1448
  %v1492 = vmul.f32 %v1491, 1.442695
  %v1493 = vpow.pop %v1492
  %1494 = vst.msk [vmem:[%s11 + $0x30] sm:$0xff] %vm1338, %v1493
  %v1495 = vadd.f32 %v1488, %v1493
  %v1496 = vld [vmem:[%s11 + $0x38] sm:$0xff]
  %v1497 = vadd.f32 %v1496, %v1425
  %v1498 = vsub.f32 %v1497, %v1448
  %v1499 = vmul.f32 %v1498, 1.442695
  %v1500 = vpow.pop %v1499
  %1501 = vst.msk [vmem:[%s11 + $0x38] sm:$0xff] %vm1338, %v1500
  %v1502 = vadd.f32 %v1495, %v1500
  %v1503 = vrcp.pop %v1502
  %v1504 = vmul.f32 1.0, %v1503
  %v1505 = vld [vmem:[%s11] sm:$0xff]
  %v1506 = vmul.f32 %v1505, %v1504
  %1507 = vst.msk [vmem:[%s11] sm:$0xff] %vm1338, %v1506
  %v1508 = vld [vmem:[#allocation2] sm:$0xff]
  %1510 = vset.pattern.permute.xlu0 0
  %1511 = vperm.xlu0 %1510, %v1506
  %v1512 = vpop.permute.xlu0 %1511
  %v1514 = vmul.f32 %v1512, %v1508
  %v1515 = vadd.f32 %v1514, 0.0
  %v1516 = vld [vmem:[%s11 + $0x8] sm:$0xff]
  %v1517 = vmul.f32 %v1516, %v1504
  %1518 = vst.msk [vmem:[%s11 + $0x8] sm:$0xff] %vm1338, %v1517
  %v1519 = vld [vmem:[#allocation2 + $0x8] sm:$0xff]
  %1521 = vset.pattern.permute.xlu0 0
  %1522 = vperm.xlu0 %1521, %v1517
  %v1523 = vpop.permute.xlu0 %1522
  %v1525 = vmul.f32 %v1523, %v1519
  %v1526 = vadd.f32 %v1515, %v1525
  %v1527 = vld [vmem:[%s11 + $0x10] sm:$0xff]
  %v1528 = vmul.f32 %v1527, %v1504
  %1529 = vst.msk [vmem:[%s11 + $0x10] sm:$0xff] %vm1338, %v1528
  %v1530 = vld [vmem:[#allocation2 + $0x10] sm:$0xff]
  %1532 = vset.pattern.permute.xlu0 0
  %1533 = vperm.xlu0 %1532, %v1528
  %v1534 = vpop.permute.xlu0 %1533
  %v1536 = vmul.f32 %v1534, %v1530
  %v1537 = vadd.f32 %v1526, %v1536
  %v1538 = vld [vmem:[%s11 + $0x18] sm:$0xff]
  %v1539 = vmul.f32 %v1538, %v1504
  %1540 = vst.msk [vmem:[%s11 + $0x18] sm:$0xff] %vm1338, %v1539
  %v1541 = vld [vmem:[#allocation2 + $0x18] sm:$0xff]
  %1543 = vset.pattern.permute.xlu0 0
  %1544 = vperm.xlu0 %1543, %v1539
  %v1545 = vpop.permute.xlu0 %1544
  %v1547 = vmul.f32 %v1545, %v1541
  %v1548 = vadd.f32 %v1537, %v1547
  %v1549 = vld [vmem:[%s11 + $0x20] sm:$0xff]
  %v1550 = vmul.f32 %v1549, %v1504
  %1551 = vst.msk [vmem:[%s11 + $0x20] sm:$0xff] %vm1338, %v1550
  %v1552 = vld [vmem:[#allocation2 + $0x20] sm:$0xff]
  %1554 = vset.pattern.permute.xlu0 0
  %1555 = vperm.xlu0 %1554, %v1550
  %v1556 = vpop.permute.xlu0 %1555
  %v1558 = vmul.f32 %v1556, %v1552
  %v1559 = vadd.f32 %v1548, %v1558
  %v1560 = vld [vmem:[%s11 + $0x28] sm:$0xff]
  %v1561 = vmul.f32 %v1560, %v1504
  %1562 = vst.msk [vmem:[%s11 + $0x28] sm:$0xff] %vm1338, %v1561
  %v1563 = vld [vmem:[#allocation2 + $0x28] sm:$0xff]
  %1565 = vset.pattern.permute.xlu0 0
  %1566 = vperm.xlu0 %1565, %v1561
  %v1567 = vpop.permute.xlu0 %1566
  %v1569 = vmul.f32 %v1567, %v1563
  %v1570 = vadd.f32 %v1559, %v1569
  %v1571 = vld [vmem:[%s11 + $0x30] sm:$0xff]
  %v1572 = vmul.f32 %v1571, %v1504
  %1573 = vst.msk [vmem:[%s11 + $0x30] sm:$0xff] %vm1338, %v1572
  %v1574 = vld [vmem:[#allocation2 + $0x30] sm:$0xff]
  %1576 = vset.pattern.permute.xlu0 0
  %1577 = vperm.xlu0 %1576, %v1572
  %v1578 = vpop.permute.xlu0 %1577
  %v1580 = vmul.f32 %v1578, %v1574
  %v1581 = vadd.f32 %v1570, %v1580
  %v1582 = vld [vmem:[%s11 + $0x38] sm:$0xff]
  %v1583 = vmul.f32 %v1582, %v1504
  %1584 = vst.msk [vmem:[%s11 + $0x38] sm:$0xff] %vm1338, %v1583
  %v1585 = vld [vmem:[#allocation2 + $0x38] sm:$0xff]
  %1587 = vset.pattern.permute.xlu0 0
  %1588 = vperm.xlu0 %1587, %v1583
  %v1589 = vpop.permute.xlu0 %1588
  %v1591 = vmul.f32 %v1589, %v1585
  %v1592 = vadd.f32 %v1581, %v1591
  %1593 = vst.msk [vmem:[%s12] sm:$0xff] %vm64, %v1592
  // Predicated region
  $region46: #{_lambda_.1} parent=0 // pred_check
    _
  $region47: #{_lambda_.1} parent=0 // pred_check_branch
    %1595 = sbr.rel (0) target = $region49
  $region48: #{_lambda_.1} parent=0 // pred_region
    _
  $region49: #{_lambda_.1} parent=0 // pred_fallthru
    _
  // Predicated region
  $region50: #{_lambda_.1} parent=0 // pred_check
    _
  $region51: #{_lambda_.1} parent=0 // pred_check_branch
    %1597 = sbr.rel (0) target = $region53
  $region52: #{_lambda_.1} parent=0 // pred_region
    _
  $region53: #{_lambda_.1} parent=0 // pred_fallthru
    _
  // Predicated region
  $region54: #{_lambda_.1} parent=0 // pred_check
    _
  $region55: #{_lambda_.1} parent=0 // pred_check_branch
    %1599 = sbr.rel (0) target = $region57
  $region56: #{_lambda_.1} parent=0 // pred_region
    _
  $region57: #{_lambda_.1} parent=0 // pred_fallthru
    _
  // Predicated region
  $region58: #{_lambda_.1} parent=0 // pred_check
    _
  $region59: #{_lambda_.1} parent=0 // pred_check_branch
    %1601 = sbr.rel (0) target = $region61
  $region60: #{_lambda_.1} parent=0 // pred_region
    _
  $region61: #{_lambda_.1} parent=0 // pred_fallthru
    _

</llo_original>
